<compile_context>
chip_gen: v7x
topology: tpu7x:2x2x1
jax: 0.10.0
libtpu: 0.0.40
codegen_flags: <defaults>
</compile_context>

<pallas_src>
import functools

import jax
import jax.numpy as jnp
from jax import lax
from jax.experimental import pallas as pl
from jax.experimental.pallas import tpu as pltpu

_INV_SQRT2 = 0.7071067811865476


def _erf_poly(z):
    """Abramowitz & Stegun 7.1.26 rational erf approximation (|err| < 1.5e-7).

    Built only from VPU/EUP-friendly primitives (mul/add/div/exp/select) so it
    lowers inside Mosaic without relying on an erf lowering rule; numerically
    indistinguishable from exact erf at the test tolerance.
    """
    a1, a2, a3, a4, a5 = (0.254829592, -0.284496736, 1.421413741,
                          -1.453152027, 1.061405429)
    p = 0.3275911
    az = jnp.abs(z)
    t = 1.0 / (1.0 + p * az)
    poly = ((((a5 * t + a4) * t + a3) * t + a2) * t + a1) * t
    y = 1.0 - poly * jnp.exp(-az * az)
    return jnp.where(z < 0.0, -y, y)


def _gelu_exact(h):
    # torch.nn.GELU() default: 0.5 * h * (1 + erf(h / sqrt(2)))
    return 0.5 * h * (1.0 + _erf_poly(h * _INV_SQRT2))


def _dot_nt(a, b, precision):
    """a @ b.T without materializing a transpose: contract last dims of both."""
    return lax.dot_general(a, b, (((1,), (1,)), ((), ())),
                           precision=precision,
                           preferred_element_type=jnp.float32)


# ----------------------------- kernels --------------------------------------

def _ffn_resident_kernel(x_ref, w1_ref, b1_ref, w2_ref, b2_ref, o_ref, *,
                         compute_dtype, precision):
    # x_ref  : (tm, Din)   streamed row tile
    # w1_ref : (F, Din)    resident, torch (out_features, in_features) layout
    # b1_ref : (1, F)
    # w2_ref : (Dout, F)   resident
    # b2_ref : (1, Dout)
    # o_ref  : (tm, Dout)
    x = x_ref[...].astype(compute_dtype)
    h = _dot_nt(x, w1_ref[...].astype(compute_dtype), precision)      # (tm, F) f32
    h = _gelu_exact(h + b1_ref[...].astype(jnp.float32))
    out = _dot_nt(h.astype(compute_dtype),
                  w2_ref[...].astype(compute_dtype), precision)       # (tm, Dout) f32
    o_ref[...] = (out + b2_ref[...].astype(jnp.float32)).astype(o_ref.dtype)


def _ffn_ftiled_kernel(x_ref, w1_ref, b1_ref, w2_ref, b2_ref, o_ref, acc_ref, *,
                       compute_dtype, precision):
    # Grid = (row tiles, F tiles); F axis innermost / "arbitrary".
    # x_ref  : (tm, Din)   resident across the F axis (constant block index)
    # w1_ref : (tf, Din)   F-block of W1
    # b1_ref : (1, tf)
    # w2_ref : (Dout, tf)  F-block of W2
    # b2_ref : (1, Dout)
    # o_ref  : (tm, Dout)  written once, at the last F step
    # acc_ref: (tm, Dout)  f32 VMEM accumulator
    fi = pl.program_id(1)

    @pl.when(fi == 0)
    def _():
        acc_ref[...] = jnp.zeros_like(acc_ref)

    x = x_ref[...].astype(compute_dtype)
    h = _dot_nt(x, w1_ref[...].astype(compute_dtype), precision)      # (tm, tf) f32
    h = _gelu_exact(h + b1_ref[...].astype(jnp.float32))
    acc_ref[...] += _dot_nt(h.astype(compute_dtype),
                            w2_ref[...].astype(compute_dtype), precision)

    @pl.when(fi == pl.num_programs(1) - 1)
    def _():
        o_ref[...] = (acc_ref[...]
                      + b2_ref[...].astype(jnp.float32)).astype(o_ref.dtype)


# ----------------------------- wrapper ---------------------------------------

def _round_up(a: int, b: int) -> int:
    return pl.cdiv(a, b) * b


@functools.partial(jax.jit, static_argnames=("block_rows", "f_block", "mxu_dtype"))
def feed_forward(x, w1, b1, w2, b2, *, block_rows=None, f_block=None,
                 mxu_dtype=None):
    """Fused FeedForward forward pass: GELU(x @ w1.T + b1) @ w2.T + b2.

    x  : (..., Din)
    w1 : (F, Din)    torch nn.Linear weight layout (out_features, in_features)
    b1 : (F,)
    w2 : (Dout, F)
    b2 : (Dout,)
    mxu_dtype : optional dtype (e.g. jnp.bfloat16) to feed the MXU with
        low-precision operands (f32 accumulation).  Default keeps the input
        dtype; f32 uses Precision.HIGHEST to match torch f32 Linear numerics.
    """
    Din = x.shape[-1]
    F, din_w = w1.shape
    assert din_w == Din, "w1 shape mismatch"
    Dout, f_w = w2.shape
    assert f_w == F, "w2 shape mismatch"

    lead = x.shape[:-1]
    x2 = x.reshape(-1, Din)
    N = x2.shape[0]
    b1r = b1.reshape(1, F)
    b2r = b2.reshape(1, Dout)

    if mxu_dtype is not None:
        compute_dtype = jnp.dtype(mxu_dtype)
        precision = lax.Precision.DEFAULT
    else:
        compute_dtype = jnp.promote_types(x2.dtype, w1.dtype)
        precision = (lax.Precision.HIGHEST if compute_dtype == jnp.float32
                     else lax.Precision.DEFAULT)

    act_bytes = x2.dtype.itemsize
    w_bytes = w1.dtype.itemsize
    cd_bytes = jnp.dtype(compute_dtype).itemsize

    # Generation-aware VMEM budget (v5e/v6e: 128 MiB, v7x: 64 MiB per core).
    try:
        vmem_cap = int(getattr(pltpu.get_tpu_info(), "vmem_capacity_bytes",
                               64 << 20))
    except Exception:  # noqa: BLE001 - narrow: trace-time HW query only
        vmem_cap = 64 << 20
    vmem_budget = max(32 << 20, vmem_cap - (16 << 20))   # compiler headroom

    # Row tile: large for MXU efficiency, but keep the (tm, F) f32 intermediate
    # (+ its compute-dtype copy) within ~1/4 of VMEM; split into >= 2 row tiles
    # when possible so both v7x TensorCores get work.
    if block_rows is None:
        per_row = F * (4 + cd_bytes) + (Din + Dout) * (2 * act_bytes + 4)
        tm = min(512, max(8, (vmem_budget // 4) // max(per_row, 1)))
    else:
        tm = block_rows
    tm = min(tm, max(8, _round_up(pl.cdiv(N, 2), 8)))
    tm = max(8, (tm // 8) * 8)
    n_row_tiles = pl.cdiv(N, tm)    # no wrapper pad: Pallas masks the tail block

    # Weight-resident VMEM footprint (count default double buffering per spec).
    resident_bytes = (
        2 * tm * (Din + Dout) * act_bytes                  # x / out tiles
        + 2 * (F * Din + Dout * F + F + Dout) * w_bytes    # weights + biases
        + tm * F * (4 + cd_bytes)                          # f32 h + cast copy
        + tm * Dout * 4                                    # f32 out before cast
        + (4 << 20)                                        # compiler temporaries
    )
    use_f_tiling = (f_block is not None) or (resident_bytes > vmem_budget)

    tf = None
    if use_f_tiling:
        if f_block is not None:
            tf = int(f_block)
            if tf % 128 != 0 or F % tf != 0:
                raise ValueError("f_block must be a multiple of 128 dividing "
                                 f"feedforward_dim; got f_block={tf}, F={F}")
        else:
            cands = [d for d in range(128, F + 1, 128) if F % d == 0]
            if not cands:
                # TODO(synk): F not a multiple of 128 would need masked partial
                # F-blocks in the accumulator path; fall back to weight-resident.
                use_f_tiling = False
            else:
                def _step_bytes(d):
                    return (2 * tm * (Din + Dout) * act_bytes
                            + 2 * (d * Din + Dout * d + d + Dout) * w_bytes
                            + tm * d * (4 + cd_bytes)
                            + tm * Dout * 4
                            + (4 << 20))
                fitting = [d for d in cands if _step_bytes(d) <= vmem_budget]
                tf = max(fitting) if fitting else min(cands)

    vmem_limit = int(min(vmem_budget, 128 << 20))
    out_shape = jax.ShapeDtypeStruct((N, Dout), x.dtype)

    if not use_f_tiling:
        grid_spec = pltpu.PrefetchScalarGridSpec(
            num_scalar_prefetch=0,
            grid=(n_row_tiles,),
            in_specs=[
                pl.BlockSpec((tm, Din), lambda i: (i, 0)),      # x rows (streamed)
                pl.BlockSpec((F, Din), lambda i: (0, 0)),       # W1 (resident)
                pl.BlockSpec((1, F), lambda i: (0, 0)),         # b1
                pl.BlockSpec((Dout, F), lambda i: (0, 0)),      # W2 (resident)
                pl.BlockSpec((1, Dout), lambda i: (0, 0)),      # b2
            ],
            out_specs=pl.BlockSpec((tm, Dout), lambda i: (i, 0)),
        )
        kernel = functools.partial(_ffn_resident_kernel,
                                   compute_dtype=compute_dtype,
                                   precision=precision)
        dim_sem = ("parallel",)
    else:
        n_f_tiles = F // tf
        grid_spec = pltpu.PrefetchScalarGridSpec(
            num_scalar_prefetch=0,
            grid=(n_row_tiles, n_f_tiles),
            in_specs=[
                pl.BlockSpec((tm, Din), lambda i, j: (i, 0)),   # x rows
                pl.BlockSpec((tf, Din), lambda i, j: (j, 0)),   # W1 F-block
                pl.BlockSpec((1, tf), lambda i, j: (0, j)),     # b1 F-block
                pl.BlockSpec((Dout, tf), lambda i, j: (0, j)),  # W2 F-block
                pl.BlockSpec((1, Dout), lambda i, j: (0, 0)),   # b2
            ],
            out_specs=pl.BlockSpec((tm, Dout), lambda i, j: (i, 0)),
            scratch_shapes=[pltpu.VMEM((tm, Dout), jnp.float32)],
        )
        kernel = functools.partial(_ffn_ftiled_kernel,
                                   compute_dtype=compute_dtype,
                                   precision=precision)
        dim_sem = ("parallel", "arbitrary")

    out2 = pl.pallas_call(
        kernel,
        out_shape=out_shape,
        grid_spec=grid_spec,
        compiler_params=pltpu.CompilerParams(
            dimension_semantics=dim_sem,
            vmem_limit_bytes=vmem_limit,
        ),
    )(x2, w1, b1r, w2, b2r)

    return out2.reshape(lead + (Dout,))


def feed_forward_ref(x, w1, b1, w2, b2):
    """Pure-JAX reference matching PyTorch FeedForward semantics (exact GELU)."""
    xf = x.astype(jnp.float32)
    h = jnp.einsum("...i,fi->...f", xf, w1.astype(jnp.float32),
                   precision=lax.Precision.HIGHEST) + b1.astype(jnp.float32)
    h = jax.nn.gelu(h, approximate=False)           # torch.nn.GELU() default
    out = jnp.einsum("...f,of->...o", h, w2.astype(jnp.float32),
                     precision=lax.Precision.HIGHEST) + b2.astype(jnp.float32)
    return out.astype(x.dtype)


if __name__ == "__main__":
    key = jax.random.PRNGKey(0)
    (k_x, k_w1, k_b1, k_w2, k_b2,
     k_w1b, k_b1b, k_w2b, k_b2b) = jax.random.split(key, 9)

    batch, seq, input_dim = 2, 8, 32
    output_dim = input_dim

    x = jax.random.normal(k_x, (batch, seq, input_dim), dtype=jnp.float32)

    def linear_params(kw, kb, fan_out, fan_in):
        # nn.Linear init: U(-1/sqrt(fan_in), 1/sqrt(fan_in)) for weight & bias.
        bnd = 1.0 / float(fan_in) ** 0.5
        w = jax.random.uniform(kw, (fan_out, fan_in), minval=-bnd, maxval=bnd,
                               dtype=jnp.float32)
        b = jax.random.uniform(kb, (fan_out,), minval=-bnd, maxval=bnd,
                               dtype=jnp.float32)
        return w, b

    # -- config 1: FeedForward(input_dim=32) -> feedforward_dim = 4*32 = 128.
    #    Exercises the weight-resident path.
    F1 = 4 * input_dim
    w1, b1 = linear_params(k_w1, k_b1, F1, input_dim)
    w2, b2 = linear_params(k_w2, k_b2, output_dim, F1)

    out = jax.block_until_ready(feed_forward(x, w1, b1, w2, b2))
    ref = feed_forward_ref(x, w1, b1, w2, b2)
    assert out.shape == (batch, seq, output_dim) and out.dtype == x.dtype
    assert jnp.allclose(out, ref, atol=5e-3, rtol=5e-3), \
        "weight-resident path mismatch vs reference"

    # -- config 2: FeedForwardFactory(feedforward_dim=256) -> F = 256; force
    #    the F-tiled accumulator path (large-F / v7x path) with 128-wide blocks.
    F2 = 256
    w1b, b1b = linear_params(k_w1b, k_b1b, F2, input_dim)
    w2b, b2b = linear_params(k_w2b, k_b2b, output_dim, F2)

    out2 = jax.block_until_ready(feed_forward(x, w1b, b1b, w2b, b2b, f_block=128))
    ref2 = feed_forward_ref(x, w1b, b1b, w2b, b2b)
    assert out2.shape == (batch, seq, output_dim) and out2.dtype == x.dtype
    assert jnp.allclose(out2, ref2, atol=5e-3, rtol=5e-3), \
        "F-tiled path mismatch vs reference"

    print("KERNEL_OK")
</pallas_src>

<mosaic_0001>
module attributes {stable_mosaic.version = 11 : i64} {
  func.func @_ffn_resident_kernel(%arg0: i32, %arg1: memref<8x32xf32, #tpu.memory_space<vmem>>, %arg2: memref<128x32xf32, #tpu.memory_space<vmem>>, %arg3: memref<1x128xf32, #tpu.memory_space<vmem>>, %arg4: memref<32x128xf32, #tpu.memory_space<vmem>>, %arg5: memref<1x32xf32, #tpu.memory_space<vmem>>, %arg6: memref<8x32xf32, #tpu.memory_space<vmem>>) attributes {dimension_semantics = [#tpu.dimension_semantics<parallel>], iteration_bounds = array<i64: 2>, scalar_prefetch = 0 : i64, scratch_operands = 0 : i64, tpu.core_type = #tpu.core_type<tc>, window_params = [{transform_indices = @transform_0, window_bounds = array<i64: 8, 32>}, {pipeline_mode = #tpu.pipeline_mode<synchronous>, transform_indices = @transform_1, window_bounds = array<i64: 128, 32>}, {pipeline_mode = #tpu.pipeline_mode<synchronous>, transform_indices = @transform_2, window_bounds = array<i64: 1, 128>}, {pipeline_mode = #tpu.pipeline_mode<synchronous>, transform_indices = @transform_3, window_bounds = array<i64: 32, 128>}, {pipeline_mode = #tpu.pipeline_mode<synchronous>, transform_indices = @transform_4, window_bounds = array<i64: 1, 32>}, {transform_indices = @transform_5, window_bounds = array<i64: 8, 32>}]} {
    %c0 = arith.constant 0 : index
    %c0_0 = arith.constant 0 : index
    %0 = vector.load %arg1[%c0, %c0_0] : memref<8x32xf32, #tpu.memory_space<vmem>>, vector<8x32xf32>
    %c0_1 = arith.constant 0 : index
    %c0_2 = arith.constant 0 : index
    %1 = vector.load %arg2[%c0_1, %c0_2] : memref<128x32xf32, #tpu.memory_space<vmem>>, vector<128x32xf32>
    %cst = arith.constant dense<0.000000e+00> : vector<8x128xf32>
    %2 = tpu.matmul %0, %1, %cst {dimension_numbers = #tpu.dot_dimension_numbers<[1], [1], [0], [0], [0, 0, 1, 0], [], []>, precision = #tpu.contract_precision<fp32>} : vector<8x32xf32>, vector<128x32xf32>, vector<8x128xf32> -> vector<8x128xf32>
    %c0_3 = arith.constant 0 : index
    %c0_4 = arith.constant 0 : index
    %3 = vector.load %arg3[%c0_3, %c0_4] : memref<1x128xf32, #tpu.memory_space<vmem>>, vector<1x128xf32>
    %4 = vector.broadcast %3 : vector<1x128xf32> to vector<8x128xf32>
    %5 = arith.addf %2, %4 : vector<8x128xf32>
    %cst_5 = arith.constant 5.000000e-01 : f32
    %6 = vector.broadcast %cst_5 : f32 to vector<8x128xf32>
    %7 = arith.mulf %6, %5 : vector<8x128xf32>
    %cst_6 = arith.constant 0.707106769 : f32
    %8 = vector.broadcast %cst_6 : f32 to vector<8x128xf32>
    %9 = arith.mulf %5, %8 : vector<8x128xf32>
    %10 = math.absf %9 : vector<8x128xf32>
    %cst_7 = arith.constant 0.327591091 : f32
    %11 = vector.broadcast %cst_7 : f32 to vector<8x128xf32>
    %12 = arith.mulf %11, %10 : vector<8x128xf32>
    %cst_8 = arith.constant 1.000000e+00 : f32
    %13 = vector.broadcast %cst_8 : f32 to vector<8x128xf32>
    %14 = arith.addf %13, %12 : vector<8x128xf32>
    %cst_9 = arith.constant 1.000000e+00 : f32
    %15 = vector.broadcast %cst_9 : f32 to vector<8x128xf32>
    %16 = arith.divf %15, %14 : vector<8x128xf32>
    %cst_10 = arith.constant 1.06140542 : f32
    %17 = vector.broadcast %cst_10 : f32 to vector<8x128xf32>
    %18 = arith.mulf %17, %16 : vector<8x128xf32>
    %cst_11 = arith.constant -1.45315206 : f32
    %19 = vector.broadcast %cst_11 : f32 to vector<8x128xf32>
    %20 = arith.addf %18, %19 : vector<8x128xf32>
    %21 = arith.mulf %20, %16 : vector<8x128xf32>
    %cst_12 = arith.constant 1.42141378 : f32
    %22 = vector.broadcast %cst_12 : f32 to vector<8x128xf32>
    %23 = arith.addf %21, %22 : vector<8x128xf32>
    %24 = arith.mulf %23, %16 : vector<8x128xf32>
    %cst_13 = arith.constant -0.284496725 : f32
    %25 = vector.broadcast %cst_13 : f32 to vector<8x128xf32>
    %26 = arith.addf %24, %25 : vector<8x128xf32>
    %27 = arith.mulf %26, %16 : vector<8x128xf32>
    %cst_14 = arith.constant 0.254829586 : f32
    %28 = vector.broadcast %cst_14 : f32 to vector<8x128xf32>
    %29 = arith.addf %27, %28 : vector<8x128xf32>
    %30 = arith.mulf %29, %16 : vector<8x128xf32>
    %cst_15 = arith.constant 0.000000e+00 : f32
    %31 = vector.broadcast %cst_15 : f32 to vector<8x128xf32>
    %32 = arith.subf %31, %10 : vector<8x128xf32>
    %33 = arith.mulf %32, %10 : vector<8x128xf32>
    %34 = math.exp %33 : vector<8x128xf32>
    %35 = arith.mulf %30, %34 : vector<8x128xf32>
    %cst_16 = arith.constant 1.000000e+00 : f32
    %36 = vector.broadcast %cst_16 : f32 to vector<8x128xf32>
    %37 = arith.subf %36, %35 : vector<8x128xf32>
    %cst_17 = arith.constant 0.000000e+00 : f32
    %38 = vector.broadcast %cst_17 : f32 to vector<8x128xf32>
    %39 = arith.cmpf olt, %9, %38 : vector<8x128xf32>
    %cst_18 = arith.constant 0.000000e+00 : f32
    %40 = vector.broadcast %cst_18 : f32 to vector<8x128xf32>
    %41 = arith.subf %40, %37 : vector<8x128xf32>
    %42 = arith.select %39, %41, %37 : vector<8x128xi1>, vector<8x128xf32>
    %cst_19 = arith.constant 1.000000e+00 : f32
    %43 = vector.broadcast %cst_19 : f32 to vector<8x128xf32>
    %44 = arith.addf %43, %42 : vector<8x128xf32>
    %45 = arith.mulf %7, %44 : vector<8x128xf32>
    %c0_20 = arith.constant 0 : index
    %c0_21 = arith.constant 0 : index
    %46 = vector.load %arg4[%c0_20, %c0_21] : memref<32x128xf32, #tpu.memory_space<vmem>>, vector<32x128xf32>
    %cst_22 = arith.constant dense<0.000000e+00> : vector<8x32xf32>
    %47 = tpu.matmul %45, %46, %cst_22 {dimension_numbers = #tpu.dot_dimension_numbers<[1], [1], [0], [0], [0, 0, 1, 0], [], []>, precision = #tpu.contract_precision<fp32>} : vector<8x128xf32>, vector<32x128xf32>, vector<8x32xf32> -> vector<8x32xf32>
    %c0_23 = arith.constant 0 : index
    %c0_24 = arith.constant 0 : index
    %48 = vector.load %arg5[%c0_23, %c0_24] : memref<1x32xf32, #tpu.memory_space<vmem>>, vector<1x32xf32>
    %49 = vector.broadcast %48 : vector<1x32xf32> to vector<8x32xf32>
    %50 = arith.addf %47, %49 : vector<8x32xf32>
    %c0_25 = arith.constant 0 : index
    %c0_26 = arith.constant 0 : index
    %51 = vector.load %arg6[%c0_25, %c0_26] : memref<8x32xf32, #tpu.memory_space<vmem>>, vector<8x32xf32>
    tpu.vector_store %arg6[%c0_25, %c0_26], %50 {strides = array<i32>} : memref<8x32xf32, #tpu.memory_space<vmem>>, vector<8x32xf32>,
    return
  }
  func.func @transform_0(%arg0: i32) -> (i32, i32) {
    %c0_i32 = arith.constant 0 : i32
    %c0_i32_0 = arith.constant 0 : i32
    return %arg0, %c0_i32 : i32, i32
  }
  func.func @transform_1(%arg0: i32) -> (i32, i32) {
    %c0_i32 = arith.constant 0 : i32
    %c0_i32_0 = arith.constant 0 : i32
    %c0_i32_1 = arith.constant 0 : i32
    return %c0_i32, %c0_i32_0 : i32, i32
  }
  func.func @transform_2(%arg0: i32) -> (i32, i32) {
    %c0_i32 = arith.constant 0 : i32
    %c0_i32_0 = arith.constant 0 : i32
    %c0_i32_1 = arith.constant 0 : i32
    return %c0_i32, %c0_i32_0 : i32, i32
  }
  func.func @transform_3(%arg0: i32) -> (i32, i32) {
    %c0_i32 = arith.constant 0 : i32
    %c0_i32_0 = arith.constant 0 : i32
    %c0_i32_1 = arith.constant 0 : i32
    return %c0_i32, %c0_i32_0 : i32, i32
  }
  func.func @transform_4(%arg0: i32) -> (i32, i32) {
    %c0_i32 = arith.constant 0 : i32
    %c0_i32_0 = arith.constant 0 : i32
    %c0_i32_1 = arith.constant 0 : i32
    return %c0_i32, %c0_i32_0 : i32, i32
  }
  func.func @transform_5(%arg0: i32) -> (i32, i32) {
    %c0_i32 = arith.constant 0 : i32
    %c0_i32_0 = arith.constant 0 : i32
    return %arg0, %c0_i32 : i32, i32
  }
}

</mosaic_0001>

<llo_original>
// kernel: feed_forward.1
$region0: #{feed_forward.1}
  #allocation0 [shape = 'u32[]', space=smem, size = 0x4, offset = 0x4, fixed_abs, tag = 'smem constant byte address 0x4 - core index']
  #allocation1 [shape = 'u32[144,128]{1,0:T(1,128)}', space=vmem, size = 0x12000, scoped, tag = 'internal scratch']
  %s0 = inlined_call_operand.vmem [shape: f32[16,32], index: 0, kind: input, shape index: {}]
  %s1 = inlined_call_operand.vmem [shape: f32[128,32], index: 1, kind: input, shape index: {}]
  %s2 = inlined_call_operand.vmem [shape: f32[1,128], index: 2, kind: input, shape index: {}]
  %s3 = inlined_call_operand.vmem [shape: f32[32,128], index: 3, kind: input, shape index: {}]
  %s4 = inlined_call_operand.vmem [shape: f32[1,32], index: 4, kind: input, shape index: {}]
  %s5 = inlined_call_operand.hbm [shape: f32[16,32], index: 5, kind: output, shape index: {}]
  %s6 = sld [smem:[#allocation0]]
  $region53: #{feed_forward.1} parent=0
    _
  %s8 = ssub.s32 1, %s6
  %s9 = scalar_select 0, %s8, %s6
  $region1: #{feed_forward.1} parent=0
    #allocation2 [shape = 'u8[8192]{0}', space=vmem, size = 0x2000, scoped, tag = 'output window, operand 0']
    #allocation3 [shape = 's32[2]{0}', space=sflag, size = 0x8, scoped, tag = 'scoped memory for feed_forward.1']
    %10 = vsyncpa [#allocation3], 0
    %s11 = scalar_lea.sflag [#allocation3], 1
    %12 = vsyncpa %s11, 0
    loop: start=0, step=1, limit=4
    $region2: #{feed_forward.1} parent=1 // loop_pre_header
      _
    $region3: #{feed_forward.1} parent=1 // loop_header
      %s14 = sphi 0, %s18
      %p15 = scmp.ge.s32.totalorder %s14, 4
      %s24 = sphi 0, %s26
      %s27 = sphi 0, %s24
      %s28 = sphi 0, %s27
      %s44 = sphi 0, %s28
      %s48 = sphi 0, %s48
      %s50 = sphi 0, %s48
      %s51 = sphi 0, %s50
      %s65 = sphi 0, %s51
      %s69 = sphi 0, %s69
      %s71 = sphi 0, %s69
      %s72 = sphi 0, %s71
      %s86 = sphi 0, %s72
      %s90 = sphi 0, %s90
      %s92 = sphi 0, %s90
      %s93 = sphi 0, %s92
      %s107 = sphi 0, %s93
      %s111 = sphi 0, %s111
      %s113 = sphi 0, %s111
      %s114 = sphi 0, %s113
      %s128 = sphi 0, %s114
      %s134 = sphi 0, %s136
      %s137 = sphi 0, %s134
      %s138 = sphi 0, %s137
      %s154 = sphi 0, %s138
    $region4: #{feed_forward.1} parent=1 // loop_header_branch
      %17 = sbr.rel (%p15) target = $region8
    $region5: #{feed_forward.1} parent=1 // loop_body
      %s19 = ssub.s32 %s14, 1
      %s20 = ssub.s32 %s14, 2
      %s21 = sadd.s32 %s14, 1
      %s22 = ssub.s32 %s14, %s21
      %p23 = scmp.eq.s32.totalorder %s22, 0
      %s25 = sadd.s32 %s24, 1
      %s26 = scalar_select %p23, %s24, %s25
      %p29 = pneg %p23
      %p30 = scmp.eq.s32.totalorder %s14, 1
      %p31 = por %p29, %p30
      %p32 = scmp.ne.s32.totalorder %s24, %s27
      %p33 = scmp.eq.s32.totalorder %s14, 0
      %p34 = por %p32, %p33
      %p35 = scmp.ne.s32.totalorder %s24, %s27
      %p36 = scmp.eq.s32.totalorder %s19, 1
      %p37 = por %p35, %p36
      %p38 = scmp.ne.s32.totalorder %s27, %s28
      %p39 = scmp.eq.s32.totalorder %s19, 0
      %p40 = por %p38, %p39
      %p41 = scmp.ne.s32.totalorder %s27, %s28
      %p42 = scmp.eq.s32.totalorder %s20, 1
      %p43 = por %p41, %p42
      %p45 = scmp.ne.s32.totalorder %s28, %s44
      %p46 = scmp.eq.s32.totalorder %s20, 0
      %p47 = por %p45, %p46
      %s49 = sadd.s32 %s48, 1
      %p52 = scmp.eq.s32.totalorder %s14, 1
      %p53 = scmp.ne.s32.totalorder %s48, %s50
      %p54 = scmp.eq.s32.totalorder %s14, 0
      %p55 = por %p53, %p54
      %p56 = scmp.ne.s32.totalorder %s48, %s50
      %p57 = scmp.eq.s32.totalorder %s19, 1
      %p58 = por %p56, %p57
      %p59 = scmp.ne.s32.totalorder %s50, %s51
      %p60 = scmp.eq.s32.totalorder %s19, 0
      %p61 = por %p59, %p60
      %p62 = scmp.ne.s32.totalorder %s50, %s51
      %p63 = scmp.eq.s32.totalorder %s20, 1
      %p64 = por %p62, %p63
      %p66 = scmp.ne.s32.totalorder %s51, %s65
      %p67 = scmp.eq.s32.totalorder %s20, 0
      %p68 = por %p66, %p67
      %s70 = sadd.s32 %s69, 1
      %p73 = scmp.eq.s32.totalorder %s14, 1
      %p74 = scmp.ne.s32.totalorder %s69, %s71
      %p75 = scmp.eq.s32.totalorder %s14, 0
      %p76 = por %p74, %p75
      %p77 = scmp.ne.s32.totalorder %s69, %s71
      %p78 = scmp.eq.s32.totalorder %s19, 1
      %p79 = por %p77, %p78
      %p80 = scmp.ne.s32.totalorder %s71, %s72
      %p81 = scmp.eq.s32.totalorder %s19, 0
      %p82 = por %p80, %p81
      %p83 = scmp.ne.s32.totalorder %s71, %s72
      %p84 = scmp.eq.s32.totalorder %s20, 1
      %p85 = por %p83, %p84
      %p87 = scmp.ne.s32.totalorder %s72, %s86
      %p88 = scmp.eq.s32.totalorder %s20, 0
      %p89 = por %p87, %p88
      %s91 = sadd.s32 %s90, 1
      %p94 = scmp.eq.s32.totalorder %s14, 1
      %p95 = scmp.ne.s32.totalorder %s90, %s92
      %p96 = scmp.eq.s32.totalorder %s14, 0
      %p97 = por %p95, %p96
      %p98 = scmp.ne.s32.totalorder %s90, %s92
      %p99 = scmp.eq.s32.totalorder %s19, 1
      %p100 = por %p98, %p99
      %p101 = scmp.ne.s32.totalorder %s92, %s93
      %p102 = scmp.eq.s32.totalorder %s19, 0
      %p103 = por %p101, %p102
      %p104 = scmp.ne.s32.totalorder %s92, %s93
      %p105 = scmp.eq.s32.totalorder %s20, 1
      %p106 = por %p104, %p105
      %p108 = scmp.ne.s32.totalorder %s93, %s107
      %p109 = scmp.eq.s32.totalorder %s20, 0
      %p110 = por %p108, %p109
      %s112 = sadd.s32 %s111, 1
      %p115 = scmp.eq.s32.totalorder %s14, 1
      %p116 = scmp.ne.s32.totalorder %s111, %s113
      %p117 = scmp.eq.s32.totalorder %s14, 0
      %p118 = por %p116, %p117
      %p119 = scmp.ne.s32.totalorder %s111, %s113
      %p120 = scmp.eq.s32.totalorder %s19, 1
      %p121 = por %p119, %p120
      %p122 = scmp.ne.s32.totalorder %s113, %s114
      %p123 = scmp.eq.s32.totalorder %s19, 0
      %p124 = por %p122, %p123
      %p125 = scmp.ne.s32.totalorder %s113, %s114
      %p126 = scmp.eq.s32.totalorder %s20, 1
      %p127 = por %p125, %p126
      %p129 = scmp.ne.s32.totalorder %s114, %s128
      %p130 = scmp.eq.s32.totalorder %s20, 0
      %p131 = por %p129, %p130
      %s132 = ssub.s32 %s14, %s21
      %p133 = scmp.eq.s32.totalorder %s132, 0
      %s135 = sadd.s32 %s134, 1
      %s136 = scalar_select %p133, %s134, %s135
      %p139 = pneg %p133
      %p140 = scmp.eq.s32.totalorder %s14, 1
      %p141 = por %p139, %p140
      %p142 = scmp.ne.s32.totalorder %s134, %s137
      %p143 = scmp.eq.s32.totalorder %s14, 0
      %p144 = por %p142, %p143
      %p145 = scmp.ne.s32.totalorder %s134, %s137
      %p146 = scmp.eq.s32.totalorder %s19, 1
      %p147 = por %p145, %p146
      %p148 = scmp.ne.s32.totalorder %s137, %s138
      %p149 = scmp.eq.s32.totalorder %s19, 0
      %p150 = por %p148, %p149
      %p151 = scmp.ne.s32.totalorder %s137, %s138
      %p152 = scmp.eq.s32.totalorder %s20, 1
      %p153 = por %p151, %p152
      %p155 = scmp.ne.s32.totalorder %s138, %s154
      %p156 = scmp.eq.s32.totalorder %s20, 0
      %p157 = por %p155, %p156
      %p158 = scmp.le.s32.totalorder 1, %s14
      %p159 = scmp.lt.s32.totalorder %s14, 3
      %p160 = pnand %p158, %p159
      %p161 = pneg %p160
      // Predicated region
      $region9: #{feed_forward.1} parent=5 // pred_check
        _
      $region10: #{feed_forward.1} parent=5 // pred_check_branch
        %163 = sbr.rel (%p160) target = $region12
      $region11: #{feed_forward.1} parent=5 // pred_region
        %s164 = ssub.s32 %s14, 1
        // Predicated region
        $region13: #{feed_forward.1} parent=11 // pred_check
          %p165 = pneg %p61
        $region14: #{feed_forward.1} parent=11 // pred_check_branch
          %167 = sbr.rel (%p165) target = $region16
        $region15: #{feed_forward.1} parent=11 // pred_region
          _
        $region16: #{feed_forward.1} parent=11 // pred_fallthru
          _
        // Predicated region
        $region17: #{feed_forward.1} parent=11 // pred_check
          %p168 = pneg %p82
        $region18: #{feed_forward.1} parent=11 // pred_check_branch
          %170 = sbr.rel (%p168) target = $region20
        $region19: #{feed_forward.1} parent=11 // pred_region
          _
        $region20: #{feed_forward.1} parent=11 // pred_fallthru
          _
        // Predicated region
        $region21: #{feed_forward.1} parent=11 // pred_check
          %p171 = pneg %p103
        $region22: #{feed_forward.1} parent=11 // pred_check_branch
          %173 = sbr.rel (%p171) target = $region24
        $region23: #{feed_forward.1} parent=11 // pred_region
          _
        $region24: #{feed_forward.1} parent=11 // pred_fallthru
          _
        // Predicated region
        $region25: #{feed_forward.1} parent=11 // pred_check
          %p174 = pneg %p124
        $region26: #{feed_forward.1} parent=11 // pred_check_branch
          %176 = sbr.rel (%p174) target = $region28
        $region27: #{feed_forward.1} parent=11 // pred_region
          _
        $region28: #{feed_forward.1} parent=11 // pred_fallthru
          _
      $region12: #{feed_forward.1} parent=5 // pred_fallthru
        _
      %p177 = scmp.lt.s32.totalorder %s14, 2
      // Predicated region
      $region29: #{feed_forward.1} parent=5 // pred_check
        %p178 = pneg %p177
      $region30: #{feed_forward.1} parent=5 // pred_check_branch
        %180 = sbr.rel (%p178) target = $region32
      $region31: #{feed_forward.1} parent=5 // pred_region
        // Predicated region
        $region33: #{feed_forward.1} parent=31 // pred_check
          %p181 = pneg %p34
        $region34: #{feed_forward.1} parent=31 // pred_check_branch
          %183 = sbr.rel (%p181) target = $region36
        $region35: #{feed_forward.1} parent=31 // pred_region
          %p184 = scmp.lt.s32.totalorder %s14, 1
          %s185 = scalar_select %p184, %s14, 1
          %s186 = smul.addr %s185, 8
          %s187 = scalar_lea.vmem %s0, %s186
        $region36: #{feed_forward.1} parent=31 // pred_fallthru
          _
      $region32: #{feed_forward.1} parent=5 // pred_fallthru
        _
      %p188 = scmp.le.s32.totalorder 1, %s14
      %p189 = scmp.lt.s32.totalorder %s14, 3
      %p190 = pnand %p188, %p189
      %p191 = pneg %p190
      // Predicated region
      $region37: #{feed_forward.1} parent=5 // pred_check
        _
      $region38: #{feed_forward.1} parent=5 // pred_check_branch
        %193 = sbr.rel (%p190) target = $region40
      $region39: #{feed_forward.1} parent=5 // pred_region
        %s194 = ssub.s32 %s14, 1
        %p195 = scmp.lt.s32.totalorder %s19, 1
        %s196 = scalar_select %p195, %s19, 1
        %s197 = smul.addr %s196, 8
        %s198 = scalar_lea.vmem %s0, %s197
        %p199 = pneg %p40
        %p200 = pneg %p37
        %p201 = pneg %p61
        %p202 = pneg %p58
        %p203 = pneg %p82
        %p204 = pneg %p79
        %p205 = pneg %p103
        %p206 = pneg %p100
        %p207 = pneg %p124
        %p208 = pneg %p121
        %p209 = pneg %p150
        %p210 = pneg %p147
        %s211 = sand.u32 %s137, 1
        %s212 = scalar_lea.sflag [#allocation3], %s211
        %s213 = sand.u32 %s137, 1
        %s214 = smul.addr %s213, 8
        %s215 = scalar_lea.vmem [#allocation2], %s214
        %p216 = scmp.lt.s32.totalorder %s19, 1
        %s217 = scalar_select %p216, %s19, 1
        %s218 = smul.addr %s217, 8
        %s219 = scalar_lea.vmem %s0, %s218
        %v220 = vld [vmem:[%s219] sm:$0xff]
        %v221 = vld [vmem:[%s1] sm:$0xff]
        %v222 = vld [vmem:[%s1 + $0x8] sm:$0xff]
        %v223 = vld [vmem:[%s1 + $0x10] sm:$0xff]
        %v224 = vld [vmem:[%s1 + $0x18] sm:$0xff]
        %v225 = vld [vmem:[%s1 + $0x20] sm:$0xff]
        %v226 = vld [vmem:[%s1 + $0x28] sm:$0xff]
        %v227 = vld [vmem:[%s1 + $0x30] sm:$0xff]
        %v228 = vld [vmem:[%s1 + $0x38] sm:$0xff]
        %v229 = vld [vmem:[%s1 + $0x40] sm:$0xff]
        %v230 = vld [vmem:[%s1 + $0x48] sm:$0xff]
        %v231 = vld [vmem:[%s1 + $0x50] sm:$0xff]
        %v232 = vld [vmem:[%s1 + $0x58] sm:$0xff]
        %v233 = vld [vmem:[%s1 + $0x60] sm:$0xff]
        %v234 = vld [vmem:[%s1 + $0x68] sm:$0xff]
        %v235 = vld [vmem:[%s1 + $0x70] sm:$0xff]
        %v236 = vld [vmem:[%s1 + $0x78] sm:$0xff]
        %v237 = vld [vmem:[%s2] sm:$0x1]
        %v239 = vlaneseq
        %v240 = vshrl.u32 %v239, 7
        %v241 = vsub.s32 0, %v240
        %v242 = vrot.slane %v237, %v241
        %vm244 = vcmask 261120
        %v246 = vsel %vm244, %v220, 0
        %v249 = vsel %vm244, %v221, 0
        %v252 = vsel %vm244, %v222, 0
        %v255 = vsel %vm244, %v223, 0
        %v258 = vsel %vm244, %v224, 0
        %v261 = vsel %vm244, %v225, 0
        %v264 = vsel %vm244, %v226, 0
        %v267 = vsel %vm244, %v227, 0
        %v270 = vsel %vm244, %v228, 0
        %v273 = vsel %vm244, %v229, 0
        %v276 = vsel %vm244, %v230, 0
        %v279 = vsel %vm244, %v231, 0
        %v282 = vsel %vm244, %v232, 0
        %v285 = vsel %vm244, %v233, 0
        %v288 = vsel %vm244, %v234, 0
        %v291 = vsel %vm244, %v235, 0
        %v294 = vsel %vm244, %v236, 0
        %296 = vmatprep.subr.mxu0 0.0
        %v297 = vand.u32 %v249, 4294901760
        %298 = vmatpush1.xpose.msra.mxu0 %v297
        %299 = vmatprep.subr.mxu0 0.0
        %v300 = vand.u32 %v252, 4294901760
        %301 = vmatpush1.xpose.msra.mxu0 %v300
        %302 = vmatprep.subr.mxu0 0.0
        %v303 = vand.u32 %v255, 4294901760
        %304 = vmatpush1.xpose.msra.mxu0 %v303
        %305 = vmatprep.subr.mxu0 0.0
        %v306 = vand.u32 %v258, 4294901760
        %307 = vmatpush1.xpose.msra.mxu0 %v306
        %308 = vmatprep.subr.mxu0 0.0
        %v309 = vand.u32 %v261, 4294901760
        %310 = vmatpush1.xpose.msra.mxu0 %v309
        %311 = vmatprep.subr.mxu0 0.0
        %v312 = vand.u32 %v264, 4294901760
        %313 = vmatpush1.xpose.msra.mxu0 %v312
        %314 = vmatprep.subr.mxu0 0.0
        %v315 = vand.u32 %v267, 4294901760
        %316 = vmatpush1.xpose.msra.mxu0 %v315
        %317 = vmatprep.subr.mxu0 0.0
        %v318 = vand.u32 %v270, 4294901760
        %319 = vmatpush1.xpose.msra.mxu0 %v318
        %320 = vmatprep.subr.mxu0 0.0
        %v321 = vand.u32 %v273, 4294901760
        %322 = vmatpush1.xpose.msra.mxu0 %v321
        %323 = vmatprep.subr.mxu0 0.0
        %v324 = vand.u32 %v276, 4294901760
        %325 = vmatpush1.xpose.msra.mxu0 %v324
        %326 = vmatprep.subr.mxu0 0.0
        %v327 = vand.u32 %v279, 4294901760
        %328 = vmatpush1.xpose.msra.mxu0 %v327
        %329 = vmatprep.subr.mxu0 0.0
        %v330 = vand.u32 %v282, 4294901760
        %331 = vmatpush1.xpose.msra.mxu0 %v330
        %332 = vmatprep.subr.mxu0 0.0
        %v333 = vand.u32 %v285, 4294901760
        %334 = vmatpush1.xpose.msra.mxu0 %v333
        %335 = vmatprep.subr.mxu0 0.0
        %v336 = vand.u32 %v288, 4294901760
        %337 = vmatpush1.xpose.msra.mxu0 %v336
        %338 = vmatprep.subr.mxu0 0.0
        %v339 = vand.u32 %v291, 4294901760
        %340 = vmatpush1.xpose.msra.mxu0 %v339
        %341 = vmatprep.subr.mxu0 0.0
        %v342 = vand.u32 %v294, 4294901760
        %343 = vmatpush1.xpose.msra.mxu0 %v342
        %344 = vmatprep.subr.mxu0 0.0
        %345 = vmatpush1.xpose.msra.mxu0 0.0
        %346 = vmatprep.subr.mxu0 0.0
        %347 = vmatpush1.xpose.msra.mxu0 0.0
        %348 = vmatprep.subr.mxu0 0.0
        %349 = vmatpush1.xpose.msra.mxu0 0.0
        %350 = vmatprep.subr.mxu0 0.0
        %351 = vmatpush1.xpose.msra.mxu0 0.0
        %352 = vmatprep.subr.mxu0 0.0
        %353 = vmatpush1.xpose.msra.mxu0 0.0
        %354 = vmatprep.subr.mxu0 0.0
        %355 = vmatpush1.xpose.msra.mxu0 0.0
        %356 = vmatprep.subr.mxu0 0.0
        %357 = vmatpush1.xpose.msra.mxu0 0.0
        %358 = vmatprep.subr.mxu0 0.0
        %359 = vmatpush1.xpose.msra.mxu0 0.0
        %360 = vmatprep.subr.mxu0 0.0
        %361 = vmatpush1.xpose.msra.mxu0 0.0
        %362 = vmatprep.subr.mxu0 0.0
        %363 = vmatpush1.xpose.msra.mxu0 0.0
        %364 = vmatprep.subr.mxu0 0.0
        %365 = vmatpush1.xpose.msra.mxu0 0.0
        %366 = vmatprep.subr.mxu0 0.0
        %367 = vmatpush1.xpose.msra.mxu0 0.0
        %368 = vmatprep.subr.mxu0 0.0
        %369 = vmatpush1.xpose.msra.mxu0 0.0
        %370 = vmatprep.subr.mxu0 0.0
        %371 = vmatpush1.xpose.msra.mxu0 0.0
        %372 = vmatprep.subr.mxu0 0.0
        %373 = vmatpush1.xpose.msra.mxu0 0.0
        %374 = vmatprep.subr.mxu0 0.0
        %375 = vmatpush1.xpose.msra.mxu0 0.0
        %376 = vmatprep.mubr.f32.mxu0 0.0
        %v377 = vand.u32 %v246, 4294901760
        %v378 = vsub.f32 %v246, %v377
        %v379 = vand.u32 %v378, 4294901760
        %v380 = vsub.f32 %v378, %v379
        %v381 = vand.u32 %v380, 4294901760
        %382 = vmatmul.mubr.f32.gmra.mrb[0].mxu0 %v381
        %v383 = vpop.f32.mrb[0].mxu0
        %v384 = vadd.f32 %v242, %v383
        %v385 = vpop.f32.mrb[0].mxu0
        %386 = vdwg.mxu0
        %387 = vmatprep.subr.mxu0 0.0
        %v388 = vand.u32 %v249, 4294901760
        %v389 = vsub.f32 %v249, %v388
        %v390 = vand.u32 %v389, 4294901760
        %v391 = vsub.f32 %v389, %v390
        %v392 = vand.u32 %v391, 4294901760
        %393 = vmatpush1.xpose.msra.mxu0 %v392
        %394 = vmatprep.subr.mxu0 0.0
        %v395 = vand.u32 %v252, 4294901760
        %v396 = vsub.f32 %v252, %v395
        %v397 = vand.u32 %v396, 4294901760
        %v398 = vsub.f32 %v396, %v397
        %v399 = vand.u32 %v398, 4294901760
        %400 = vmatpush1.xpose.msra.mxu0 %v399
        %401 = vmatprep.subr.mxu0 0.0
        %v402 = vand.u32 %v255, 4294901760
        %v403 = vsub.f32 %v255, %v402
        %v404 = vand.u32 %v403, 4294901760
        %v405 = vsub.f32 %v403, %v404
        %v406 = vand.u32 %v405, 4294901760
        %407 = vmatpush1.xpose.msra.mxu0 %v406
        %408 = vmatprep.subr.mxu0 0.0
        %v409 = vand.u32 %v258, 4294901760
        %v410 = vsub.f32 %v258, %v409
        %v411 = vand.u32 %v410, 4294901760
        %v412 = vsub.f32 %v410, %v411
        %v413 = vand.u32 %v412, 4294901760
        %414 = vmatpush1.xpose.msra.mxu0 %v413
        %415 = vmatprep.subr.mxu0 0.0
        %v416 = vand.u32 %v261, 4294901760
        %v417 = vsub.f32 %v261, %v416
        %v418 = vand.u32 %v417, 4294901760
        %v419 = vsub.f32 %v417, %v418
        %v420 = vand.u32 %v419, 4294901760
        %421 = vmatpush1.xpose.msra.mxu0 %v420
        %422 = vmatprep.subr.mxu0 0.0
        %v423 = vand.u32 %v264, 4294901760
        %v424 = vsub.f32 %v264, %v423
        %v425 = vand.u32 %v424, 4294901760
        %v426 = vsub.f32 %v424, %v425
        %v427 = vand.u32 %v426, 4294901760
        %428 = vmatpush1.xpose.msra.mxu0 %v427
        %429 = vmatprep.subr.mxu0 0.0
        %v430 = vand.u32 %v267, 4294901760
        %v431 = vsub.f32 %v267, %v430
        %v432 = vand.u32 %v431, 4294901760
        %v433 = vsub.f32 %v431, %v432
        %v434 = vand.u32 %v433, 4294901760
        %435 = vmatpush1.xpose.msra.mxu0 %v434
        %436 = vmatprep.subr.mxu0 0.0
        %v437 = vand.u32 %v270, 4294901760
        %v438 = vsub.f32 %v270, %v437
        %v439 = vand.u32 %v438, 4294901760
        %v440 = vsub.f32 %v438, %v439
        %v441 = vand.u32 %v440, 4294901760
        %442 = vmatpush1.xpose.msra.mxu0 %v441
        %443 = vmatprep.subr.mxu0 0.0
        %v444 = vand.u32 %v273, 4294901760
        %v445 = vsub.f32 %v273, %v444
        %v446 = vand.u32 %v445, 4294901760
        %v447 = vsub.f32 %v445, %v446
        %v448 = vand.u32 %v447, 4294901760
        %449 = vmatpush1.xpose.msra.mxu0 %v448
        %450 = vmatprep.subr.mxu0 0.0
        %v451 = vand.u32 %v276, 4294901760
        %v452 = vsub.f32 %v276, %v451
        %v453 = vand.u32 %v452, 4294901760
        %v454 = vsub.f32 %v452, %v453
        %v455 = vand.u32 %v454, 4294901760
        %456 = vmatpush1.xpose.msra.mxu0 %v455
        %457 = vmatprep.subr.mxu0 0.0
        %v458 = vand.u32 %v279, 4294901760
        %v459 = vsub.f32 %v279, %v458
        %v460 = vand.u32 %v459, 4294901760
        %v461 = vsub.f32 %v459, %v460
        %v462 = vand.u32 %v461, 4294901760
        %463 = vmatpush1.xpose.msra.mxu0 %v462
        %464 = vmatprep.subr.mxu0 0.0
        %v465 = vand.u32 %v282, 4294901760
        %v466 = vsub.f32 %v282, %v465
        %v467 = vand.u32 %v466, 4294901760
        %v468 = vsub.f32 %v466, %v467
        %v469 = vand.u32 %v468, 4294901760
        %470 = vmatpush1.xpose.msra.mxu0 %v469
        %471 = vmatprep.subr.mxu0 0.0
        %v472 = vand.u32 %v285, 4294901760
        %v473 = vsub.f32 %v285, %v472
        %v474 = vand.u32 %v473, 4294901760
        %v475 = vsub.f32 %v473, %v474
        %v476 = vand.u32 %v475, 4294901760
        %477 = vmatpush1.xpose.msra.mxu0 %v476
        %478 = vmatprep.subr.mxu0 0.0
        %v479 = vand.u32 %v288, 4294901760
        %v480 = vsub.f32 %v288, %v479
        %v481 = vand.u32 %v480, 4294901760
        %v482 = vsub.f32 %v480, %v481
        %v483 = vand.u32 %v482, 4294901760
        %484 = vmatpush1.xpose.msra.mxu0 %v483
        %485 = vmatprep.subr.mxu0 0.0
        %v486 = vand.u32 %v291, 4294901760
        %v487 = vsub.f32 %v291, %v486
        %v488 = vand.u32 %v487, 4294901760
        %v489 = vsub.f32 %v487, %v488
        %v490 = vand.u32 %v489, 4294901760
        %491 = vmatpush1.xpose.msra.mxu0 %v490
        %492 = vmatprep.subr.mxu0 0.0
        %v493 = vand.u32 %v294, 4294901760
        %v494 = vsub.f32 %v294, %v493
        %v495 = vand.u32 %v494, 4294901760
        %v496 = vsub.f32 %v494, %v495
        %v497 = vand.u32 %v496, 4294901760
        %498 = vmatpush1.xpose.msra.mxu0 %v497
        %499 = vmatprep.subr.mxu0 0.0
        %500 = vmatpush1.xpose.msra.mxu0 0.0
        %501 = vmatprep.subr.mxu0 0.0
        %502 = vmatpush1.xpose.msra.mxu0 0.0
        %503 = vmatprep.subr.mxu0 0.0
        %504 = vmatpush1.xpose.msra.mxu0 0.0
        %505 = vmatprep.subr.mxu0 0.0
        %506 = vmatpush1.xpose.msra.mxu0 0.0
        %507 = vmatprep.subr.mxu0 0.0
        %508 = vmatpush1.xpose.msra.mxu0 0.0
        %509 = vmatprep.subr.mxu0 0.0
        %510 = vmatpush1.xpose.msra.mxu0 0.0
        %511 = vmatprep.subr.mxu0 0.0
        %512 = vmatpush1.xpose.msra.mxu0 0.0
        %513 = vmatprep.subr.mxu0 0.0
        %514 = vmatpush1.xpose.msra.mxu0 0.0
        %515 = vmatprep.subr.mxu0 0.0
        %516 = vmatpush1.xpose.msra.mxu0 0.0
        %517 = vmatprep.subr.mxu0 0.0
        %518 = vmatpush1.xpose.msra.mxu0 0.0
        %519 = vmatprep.subr.mxu0 0.0
        %520 = vmatpush1.xpose.msra.mxu0 0.0
        %521 = vmatprep.subr.mxu0 0.0
        %522 = vmatpush1.xpose.msra.mxu0 0.0
        %523 = vmatprep.subr.mxu0 0.0
        %524 = vmatpush1.xpose.msra.mxu0 0.0
        %525 = vmatprep.subr.mxu0 0.0
        %526 = vmatpush1.xpose.msra.mxu0 0.0
        %527 = vmatprep.subr.mxu0 0.0
        %528 = vmatpush1.xpose.msra.mxu0 0.0
        %529 = vmatprep.subr.mxu0 0.0
        %530 = vmatpush1.xpose.msra.mxu0 0.0
        %531 = vmatprep.mubr.f32.mxu0 0.0
        %v532 = vand.u32 %v246, 4294901760
        %533 = vmatmul.mubr.f32.gmra.mrb[0].mxu0 %v532
        %v534 = vpop.f32.mrb[0].mxu0
        %v535 = vadd.f32 %v384, %v534
        %v536 = vpop.f32.mrb[0].mxu0
        %537 = vdwg.mxu0
        %538 = vmatprep.subr.mxu0 0.0
        %v539 = vand.u32 %v249, 4294901760
        %v540 = vsub.f32 %v249, %v539
        %541 = vmatpush1.xpose.msra.mxu0 %v540
        %542 = vmatprep.subr.mxu0 0.0
        %v543 = vand.u32 %v252, 4294901760
        %v544 = vsub.f32 %v252, %v543
        %545 = vmatpush1.xpose.msra.mxu0 %v544
        %546 = vmatprep.subr.mxu0 0.0
        %v547 = vand.u32 %v255, 4294901760
        %v548 = vsub.f32 %v255, %v547
        %549 = vmatpush1.xpose.msra.mxu0 %v548
        %550 = vmatprep.subr.mxu0 0.0
        %v551 = vand.u32 %v258, 4294901760
        %v552 = vsub.f32 %v258, %v551
        %553 = vmatpush1.xpose.msra.mxu0 %v552
        %554 = vmatprep.subr.mxu0 0.0
        %v555 = vand.u32 %v261, 4294901760
        %v556 = vsub.f32 %v261, %v555
        %557 = vmatpush1.xpose.msra.mxu0 %v556
        %558 = vmatprep.subr.mxu0 0.0
        %v559 = vand.u32 %v264, 4294901760
        %v560 = vsub.f32 %v264, %v559
        %561 = vmatpush1.xpose.msra.mxu0 %v560
        %562 = vmatprep.subr.mxu0 0.0
        %v563 = vand.u32 %v267, 4294901760
        %v564 = vsub.f32 %v267, %v563
        %565 = vmatpush1.xpose.msra.mxu0 %v564
        %566 = vmatprep.subr.mxu0 0.0
        %v567 = vand.u32 %v270, 4294901760
        %v568 = vsub.f32 %v270, %v567
        %569 = vmatpush1.xpose.msra.mxu0 %v568
        %570 = vmatprep.subr.mxu0 0.0
        %v571 = vand.u32 %v273, 4294901760
        %v572 = vsub.f32 %v273, %v571
        %573 = vmatpush1.xpose.msra.mxu0 %v572
        %574 = vmatprep.subr.mxu0 0.0
        %v575 = vand.u32 %v276, 4294901760
        %v576 = vsub.f32 %v276, %v575
        %577 = vmatpush1.xpose.msra.mxu0 %v576
        %578 = vmatprep.subr.mxu0 0.0
        %v579 = vand.u32 %v279, 4294901760
        %v580 = vsub.f32 %v279, %v579
        %581 = vmatpush1.xpose.msra.mxu0 %v580
        %582 = vmatprep.subr.mxu0 0.0
        %v583 = vand.u32 %v282, 4294901760
        %v584 = vsub.f32 %v282, %v583
        %585 = vmatpush1.xpose.msra.mxu0 %v584
        %586 = vmatprep.subr.mxu0 0.0
        %v587 = vand.u32 %v285, 4294901760
        %v588 = vsub.f32 %v285, %v587
        %589 = vmatpush1.xpose.msra.mxu0 %v588
        %590 = vmatprep.subr.mxu0 0.0
        %v591 = vand.u32 %v288, 4294901760
        %v592 = vsub.f32 %v288, %v591
        %593 = vmatpush1.xpose.msra.mxu0 %v592
        %594 = vmatprep.subr.mxu0 0.0
        %v595 = vand.u32 %v291, 4294901760
        %v596 = vsub.f32 %v291, %v595
        %597 = vmatpush1.xpose.msra.mxu0 %v596
        %598 = vmatprep.subr.mxu0 0.0
        %v599 = vand.u32 %v294, 4294901760
        %v600 = vsub.f32 %v294, %v599
        %601 = vmatpush1.xpose.msra.mxu0 %v600
        %602 = vmatprep.subr.mxu0 0.0
        %603 = vmatpush1.xpose.msra.mxu0 0.0
        %604 = vmatprep.subr.mxu0 0.0
        %605 = vmatpush1.xpose.msra.mxu0 0.0
        %606 = vmatprep.subr.mxu0 0.0
        %607 = vmatpush1.xpose.msra.mxu0 0.0
        %608 = vmatprep.subr.mxu0 0.0
        %609 = vmatpush1.xpose.msra.mxu0 0.0
        %610 = vmatprep.subr.mxu0 0.0
        %611 = vmatpush1.xpose.msra.mxu0 0.0
        %612 = vmatprep.subr.mxu0 0.0
        %613 = vmatpush1.xpose.msra.mxu0 0.0
        %614 = vmatprep.subr.mxu0 0.0
        %615 = vmatpush1.xpose.msra.mxu0 0.0
        %616 = vmatprep.subr.mxu0 0.0
        %617 = vmatpush1.xpose.msra.mxu0 0.0
        %618 = vmatprep.subr.mxu0 0.0
        %619 = vmatpush1.xpose.msra.mxu0 0.0
        %620 = vmatprep.subr.mxu0 0.0
        %621 = vmatpush1.xpose.msra.mxu0 0.0
        %622 = vmatprep.subr.mxu0 0.0
        %623 = vmatpush1.xpose.msra.mxu0 0.0
        %624 = vmatprep.subr.mxu0 0.0
        %625 = vmatpush1.xpose.msra.mxu0 0.0
        %626 = vmatprep.subr.mxu0 0.0
        %627 = vmatpush1.xpose.msra.mxu0 0.0
        %628 = vmatprep.subr.mxu0 0.0
        %629 = vmatpush1.xpose.msra.mxu0 0.0
        %630 = vmatprep.subr.mxu0 0.0
        %631 = vmatpush1.xpose.msra.mxu0 0.0
        %632 = vmatprep.subr.mxu0 0.0
        %633 = vmatpush1.xpose.msra.mxu0 0.0
        %634 = vmatprep.mubr.f32.mxu0 0.0
        %v635 = vand.u32 %v246, 4294901760
        %v636 = vsub.f32 %v246, %v635
        %637 = vmatmul.mubr.f32.gmra.mrb[0].mxu0 %v636
        %v638 = vpop.f32.mrb[0].mxu0
        %v639 = vadd.f32 %v535, %v638
        %v640 = vpop.f32.mrb[0].mxu0
        %641 = vdwg.mxu0
        %642 = vmatprep.subr.mxu0 0.0
        %v643 = vand.u32 %v249, 4294901760
        %644 = vmatpush1.xpose.msra.mxu0 %v643
        %645 = vmatprep.subr.mxu0 0.0
        %v646 = vand.u32 %v252, 4294901760
        %647 = vmatpush1.xpose.msra.mxu0 %v646
        %648 = vmatprep.subr.mxu0 0.0
        %v649 = vand.u32 %v255, 4294901760
        %650 = vmatpush1.xpose.msra.mxu0 %v649
        %651 = vmatprep.subr.mxu0 0.0
        %v652 = vand.u32 %v258, 4294901760
        %653 = vmatpush1.xpose.msra.mxu0 %v652
        %654 = vmatprep.subr.mxu0 0.0
        %v655 = vand.u32 %v261, 4294901760
        %656 = vmatpush1.xpose.msra.mxu0 %v655
        %657 = vmatprep.subr.mxu0 0.0
        %v658 = vand.u32 %v264, 4294901760
        %659 = vmatpush1.xpose.msra.mxu0 %v658
        %660 = vmatprep.subr.mxu0 0.0
        %v661 = vand.u32 %v267, 4294901760
        %662 = vmatpush1.xpose.msra.mxu0 %v661
        %663 = vmatprep.subr.mxu0 0.0
        %v664 = vand.u32 %v270, 4294901760
        %665 = vmatpush1.xpose.msra.mxu0 %v664
        %666 = vmatprep.subr.mxu0 0.0
        %v667 = vand.u32 %v273, 4294901760
        %668 = vmatpush1.xpose.msra.mxu0 %v667
        %669 = vmatprep.subr.mxu0 0.0
        %v670 = vand.u32 %v276, 4294901760
        %671 = vmatpush1.xpose.msra.mxu0 %v670
        %672 = vmatprep.subr.mxu0 0.0
        %v673 = vand.u32 %v279, 4294901760
        %674 = vmatpush1.xpose.msra.mxu0 %v673
        %675 = vmatprep.subr.mxu0 0.0
        %v676 = vand.u32 %v282, 4294901760
        %677 = vmatpush1.xpose.msra.mxu0 %v676
        %678 = vmatprep.subr.mxu0 0.0
        %v679 = vand.u32 %v285, 4294901760
        %680 = vmatpush1.xpose.msra.mxu0 %v679
        %681 = vmatprep.subr.mxu0 0.0
        %v682 = vand.u32 %v288, 4294901760
        %683 = vmatpush1.xpose.msra.mxu0 %v682
        %684 = vmatprep.subr.mxu0 0.0
        %v685 = vand.u32 %v291, 4294901760
        %686 = vmatpush1.xpose.msra.mxu0 %v685
        %687 = vmatprep.subr.mxu0 0.0
        %v688 = vand.u32 %v294, 4294901760
        %689 = vmatpush1.xpose.msra.mxu0 %v688
        %690 = vmatprep.subr.mxu0 0.0
        %691 = vmatpush1.xpose.msra.mxu0 0.0
        %692 = vmatprep.subr.mxu0 0.0
        %693 = vmatpush1.xpose.msra.mxu0 0.0
        %694 = vmatprep.subr.mxu0 0.0
        %695 = vmatpush1.xpose.msra.mxu0 0.0
        %696 = vmatprep.subr.mxu0 0.0
        %697 = vmatpush1.xpose.msra.mxu0 0.0
        %698 = vmatprep.subr.mxu0 0.0
        %699 = vmatpush1.xpose.msra.mxu0 0.0
        %700 = vmatprep.subr.mxu0 0.0
        %701 = vmatpush1.xpose.msra.mxu0 0.0
        %702 = vmatprep.subr.mxu0 0.0
        %703 = vmatpush1.xpose.msra.mxu0 0.0
        %704 = vmatprep.subr.mxu0 0.0
        %705 = vmatpush1.xpose.msra.mxu0 0.0
        %706 = vmatprep.subr.mxu0 0.0
        %707 = vmatpush1.xpose.msra.mxu0 0.0
        %708 = vmatprep.subr.mxu0 0.0
        %709 = vmatpush1.xpose.msra.mxu0 0.0
        %710 = vmatprep.subr.mxu0 0.0
        %711 = vmatpush1.xpose.msra.mxu0 0.0
        %712 = vmatprep.subr.mxu0 0.0
        %713 = vmatpush1.xpose.msra.mxu0 0.0
        %714 = vmatprep.subr.mxu0 0.0
        %715 = vmatpush1.xpose.msra.mxu0 0.0
        %716 = vmatprep.subr.mxu0 0.0
        %717 = vmatpush1.xpose.msra.mxu0 0.0
        %718 = vmatprep.subr.mxu0 0.0
        %719 = vmatpush1.xpose.msra.mxu0 0.0
        %720 = vmatprep.subr.mxu0 0.0
        %721 = vmatpush1.xpose.msra.mxu0 0.0
        %722 = vmatprep.mubr.f32.mxu0 0.0
        %v723 = vand.u32 %v246, 4294901760
        %v724 = vsub.f32 %v246, %v723
        %v725 = vand.u32 %v724, 4294901760
        %726 = vmatmul.mubr.f32.gmra.mrb[0].mxu0 %v725
        %v727 = vpop.f32.mrb[0].mxu0
        %v728 = vadd.f32 %v639, %v727
        %v729 = vpop.f32.mrb[0].mxu0
        %730 = vdwg.mxu0
        %731 = vmatprep.subr.mxu0 0.0
        %v732 = vand.u32 %v249, 4294901760
        %v733 = vsub.f32 %v249, %v732
        %v734 = vand.u32 %v733, 4294901760
        %735 = vmatpush1.xpose.msra.mxu0 %v734
        %736 = vmatprep.subr.mxu0 0.0
        %v737 = vand.u32 %v252, 4294901760
        %v738 = vsub.f32 %v252, %v737
        %v739 = vand.u32 %v738, 4294901760
        %740 = vmatpush1.xpose.msra.mxu0 %v739
        %741 = vmatprep.subr.mxu0 0.0
        %v742 = vand.u32 %v255, 4294901760
        %v743 = vsub.f32 %v255, %v742
        %v744 = vand.u32 %v743, 4294901760
        %745 = vmatpush1.xpose.msra.mxu0 %v744
        %746 = vmatprep.subr.mxu0 0.0
        %v747 = vand.u32 %v258, 4294901760
        %v748 = vsub.f32 %v258, %v747
        %v749 = vand.u32 %v748, 4294901760
        %750 = vmatpush1.xpose.msra.mxu0 %v749
        %751 = vmatprep.subr.mxu0 0.0
        %v752 = vand.u32 %v261, 4294901760
        %v753 = vsub.f32 %v261, %v752
        %v754 = vand.u32 %v753, 4294901760
        %755 = vmatpush1.xpose.msra.mxu0 %v754
        %756 = vmatprep.subr.mxu0 0.0
        %v757 = vand.u32 %v264, 4294901760
        %v758 = vsub.f32 %v264, %v757
        %v759 = vand.u32 %v758, 4294901760
        %760 = vmatpush1.xpose.msra.mxu0 %v759
        %761 = vmatprep.subr.mxu0 0.0
        %v762 = vand.u32 %v267, 4294901760
        %v763 = vsub.f32 %v267, %v762
        %v764 = vand.u32 %v763, 4294901760
        %765 = vmatpush1.xpose.msra.mxu0 %v764
        %766 = vmatprep.subr.mxu0 0.0
        %v767 = vand.u32 %v270, 4294901760
        %v768 = vsub.f32 %v270, %v767
        %v769 = vand.u32 %v768, 4294901760
        %770 = vmatpush1.xpose.msra.mxu0 %v769
        %771 = vmatprep.subr.mxu0 0.0
        %v772 = vand.u32 %v273, 4294901760
        %v773 = vsub.f32 %v273, %v772
        %v774 = vand.u32 %v773, 4294901760
        %775 = vmatpush1.xpose.msra.mxu0 %v774
        %776 = vmatprep.subr.mxu0 0.0
        %v777 = vand.u32 %v276, 4294901760
        %v778 = vsub.f32 %v276, %v777
        %v779 = vand.u32 %v778, 4294901760
        %780 = vmatpush1.xpose.msra.mxu0 %v779
        %781 = vmatprep.subr.mxu0 0.0
        %v782 = vand.u32 %v279, 4294901760
        %v783 = vsub.f32 %v279, %v782
        %v784 = vand.u32 %v783, 4294901760
        %785 = vmatpush1.xpose.msra.mxu0 %v784
        %786 = vmatprep.subr.mxu0 0.0
        %v787 = vand.u32 %v282, 4294901760
        %v788 = vsub.f32 %v282, %v787
        %v789 = vand.u32 %v788, 4294901760
        %790 = vmatpush1.xpose.msra.mxu0 %v789
        %791 = vmatprep.subr.mxu0 0.0
        %v792 = vand.u32 %v285, 4294901760
        %v793 = vsub.f32 %v285, %v792
        %v794 = vand.u32 %v793, 4294901760
        %795 = vmatpush1.xpose.msra.mxu0 %v794
        %796 = vmatprep.subr.mxu0 0.0
        %v797 = vand.u32 %v288, 4294901760
        %v798 = vsub.f32 %v288, %v797
        %v799 = vand.u32 %v798, 4294901760
        %800 = vmatpush1.xpose.msra.mxu0 %v799
        %801 = vmatprep.subr.mxu0 0.0
        %v802 = vand.u32 %v291, 4294901760
        %v803 = vsub.f32 %v291, %v802
        %v804 = vand.u32 %v803, 4294901760
        %805 = vmatpush1.xpose.msra.mxu0 %v804
        %806 = vmatprep.subr.mxu0 0.0
        %v807 = vand.u32 %v294, 4294901760
        %v808 = vsub.f32 %v294, %v807
        %v809 = vand.u32 %v808, 4294901760
        %810 = vmatpush1.xpose.msra.mxu0 %v809
        %811 = vmatprep.subr.mxu0 0.0
        %812 = vmatpush1.xpose.msra.mxu0 0.0
        %813 = vmatprep.subr.mxu0 0.0
        %814 = vmatpush1.xpose.msra.mxu0 0.0
        %815 = vmatprep.subr.mxu0 0.0
        %816 = vmatpush1.xpose.msra.mxu0 0.0
        %817 = vmatprep.subr.mxu0 0.0
        %818 = vmatpush1.xpose.msra.mxu0 0.0
        %819 = vmatprep.subr.mxu0 0.0
        %820 = vmatpush1.xpose.msra.mxu0 0.0
        %821 = vmatprep.subr.mxu0 0.0
        %822 = vmatpush1.xpose.msra.mxu0 0.0
        %823 = vmatprep.subr.mxu0 0.0
        %824 = vmatpush1.xpose.msra.mxu0 0.0
        %825 = vmatprep.subr.mxu0 0.0
        %826 = vmatpush1.xpose.msra.mxu0 0.0
        %827 = vmatprep.subr.mxu0 0.0
        %828 = vmatpush1.xpose.msra.mxu0 0.0
        %829 = vmatprep.subr.mxu0 0.0
        %830 = vmatpush1.xpose.msra.mxu0 0.0
        %831 = vmatprep.subr.mxu0 0.0
        %832 = vmatpush1.xpose.msra.mxu0 0.0
        %833 = vmatprep.subr.mxu0 0.0
        %834 = vmatpush1.xpose.msra.mxu0 0.0
        %835 = vmatprep.subr.mxu0 0.0
        %836 = vmatpush1.xpose.msra.mxu0 0.0
        %837 = vmatprep.subr.mxu0 0.0
        %838 = vmatpush1.xpose.msra.mxu0 0.0
        %839 = vmatprep.subr.mxu0 0.0
        %840 = vmatpush1.xpose.msra.mxu0 0.0
        %841 = vmatprep.subr.mxu0 0.0
        %842 = vmatpush1.xpose.msra.mxu0 0.0
        %843 = vmatprep.mubr.f32.mxu0 0.0
        %v844 = vand.u32 %v246, 4294901760
        %845 = vmatmul.mubr.f32.gmra.mrb[0].mxu0 %v844
        %v846 = vpop.f32.mrb[0].mxu0
        %v847 = vadd.f32 %v728, %v846
        %v848 = vpop.f32.mrb[0].mxu0
        %849 = vdwg.mxu0
        %850 = vmatprep.subr.mxu0 0.0
        %v851 = vand.u32 %v249, 4294901760
        %852 = vmatpush1.xpose.msra.mxu0 %v851
        %853 = vmatprep.subr.mxu0 0.0
        %v854 = vand.u32 %v252, 4294901760
        %855 = vmatpush1.xpose.msra.mxu0 %v854
        %856 = vmatprep.subr.mxu0 0.0
        %v857 = vand.u32 %v255, 4294901760
        %858 = vmatpush1.xpose.msra.mxu0 %v857
        %859 = vmatprep.subr.mxu0 0.0
        %v860 = vand.u32 %v258, 4294901760
        %861 = vmatpush1.xpose.msra.mxu0 %v860
        %862 = vmatprep.subr.mxu0 0.0
        %v863 = vand.u32 %v261, 4294901760
        %864 = vmatpush1.xpose.msra.mxu0 %v863
        %865 = vmatprep.subr.mxu0 0.0
        %v866 = vand.u32 %v264, 4294901760
        %867 = vmatpush1.xpose.msra.mxu0 %v866
        %868 = vmatprep.subr.mxu0 0.0
        %v869 = vand.u32 %v267, 4294901760
        %870 = vmatpush1.xpose.msra.mxu0 %v869
        %871 = vmatprep.subr.mxu0 0.0
        %v872 = vand.u32 %v270, 4294901760
        %873 = vmatpush1.xpose.msra.mxu0 %v872
        %874 = vmatprep.subr.mxu0 0.0
        %v875 = vand.u32 %v273, 4294901760
        %876 = vmatpush1.xpose.msra.mxu0 %v875
        %877 = vmatprep.subr.mxu0 0.0
        %v878 = vand.u32 %v276, 4294901760
        %879 = vmatpush1.xpose.msra.mxu0 %v878
        %880 = vmatprep.subr.mxu0 0.0
        %v881 = vand.u32 %v279, 4294901760
        %882 = vmatpush1.xpose.msra.mxu0 %v881
        %883 = vmatprep.subr.mxu0 0.0
        %v884 = vand.u32 %v282, 4294901760
        %885 = vmatpush1.xpose.msra.mxu0 %v884
        %886 = vmatprep.subr.mxu0 0.0
        %v887 = vand.u32 %v285, 4294901760
        %888 = vmatpush1.xpose.msra.mxu0 %v887
        %889 = vmatprep.subr.mxu0 0.0
        %v890 = vand.u32 %v288, 4294901760
        %891 = vmatpush1.xpose.msra.mxu0 %v890
        %892 = vmatprep.subr.mxu0 0.0
        %v893 = vand.u32 %v291, 4294901760
        %894 = vmatpush1.xpose.msra.mxu0 %v893
        %895 = vmatprep.subr.mxu0 0.0
        %v896 = vand.u32 %v294, 4294901760
        %897 = vmatpush1.xpose.msra.mxu0 %v896
        %898 = vmatprep.subr.mxu0 0.0
        %899 = vmatpush1.xpose.msra.mxu0 0.0
        %900 = vmatprep.subr.mxu0 0.0
        %901 = vmatpush1.xpose.msra.mxu0 0.0
        %902 = vmatprep.subr.mxu0 0.0
        %903 = vmatpush1.xpose.msra.mxu0 0.0
        %904 = vmatprep.subr.mxu0 0.0
        %905 = vmatpush1.xpose.msra.mxu0 0.0
        %906 = vmatprep.subr.mxu0 0.0
        %907 = vmatpush1.xpose.msra.mxu0 0.0
        %908 = vmatprep.subr.mxu0 0.0
        %909 = vmatpush1.xpose.msra.mxu0 0.0
        %910 = vmatprep.subr.mxu0 0.0
        %911 = vmatpush1.xpose.msra.mxu0 0.0
        %912 = vmatprep.subr.mxu0 0.0
        %913 = vmatpush1.xpose.msra.mxu0 0.0
        %914 = vmatprep.subr.mxu0 0.0
        %915 = vmatpush1.xpose.msra.mxu0 0.0
        %916 = vmatprep.subr.mxu0 0.0
        %917 = vmatpush1.xpose.msra.mxu0 0.0
        %918 = vmatprep.subr.mxu0 0.0
        %919 = vmatpush1.xpose.msra.mxu0 0.0
        %920 = vmatprep.subr.mxu0 0.0
        %921 = vmatpush1.xpose.msra.mxu0 0.0
        %922 = vmatprep.subr.mxu0 0.0
        %923 = vmatpush1.xpose.msra.mxu0 0.0
        %924 = vmatprep.subr.mxu0 0.0
        %925 = vmatpush1.xpose.msra.mxu0 0.0
        %926 = vmatprep.subr.mxu0 0.0
        %927 = vmatpush1.xpose.msra.mxu0 0.0
        %928 = vmatprep.subr.mxu0 0.0
        %929 = vmatpush1.xpose.msra.mxu0 0.0
        %930 = vmatprep.mubr.f32.mxu0 0.0
        %v931 = vand.u32 %v246, 4294901760
        %932 = vmatmul.mubr.f32.gmra.mrb[0].mxu0 %v931
        %v933 = vpop.f32.mrb[0].mxu0
        %v934 = vadd.f32 %v847, %v933
        %v935 = vpop.f32.mrb[0].mxu0
        %936 = vdwg.mxu0
        %v937 = vmul.f32 %v934, 0.5
        %v938 = vmul.f32 %v934, 0.70710677
        %v939 = vand.u32 2147483647, %v938
        %v940 = vmul.f32 %v939, 0.3275911
        %v941 = vadd.f32 %v940, 1.0
        %v942 = vrcp.pop %v941
        %v943 = vmul.f32 1.0, %v942
        %v944 = vmul.f32 %v943, 1.0614054
        %v945 = vadd.f32 %v944, -1.4531521
        %v946 = vmul.f32 %v945, %v943
        %v947 = vadd.f32 %v946, 1.4214138
        %v948 = vmul.f32 %v947, %v943
        %v949 = vadd.f32 %v948, -0.28449672
        %v950 = vmul.f32 %v949, %v943
        %v951 = vadd.f32 %v950, 0.2548296
        %v952 = vmul.f32 %v951, %v943
        %v953 = vsub.f32 0.0, %v939
        %v954 = vmul.f32 %v953, %v939
        %v955 = vmul.f32 %v954, 1.442695
        %v956 = vpow.pop %v955
        %v957 = vmul.f32 %v952, %v956
        %v958 = vsub.f32 1.0, %v957
        %vm959 = vcmp.lt.f32.partialorder %v938, 0.0
        %v960 = vsub.f32 0.0, %v958
        %v961 = vsel %vm959, %v960, %v958
        %v962 = vadd.f32 %v961, 1.0
        %v963 = vmul.f32 %v937, %v962
        %v964 = vld [vmem:[%s3] sm:$0xff]
        %v965 = vld [vmem:[%s3 + $0x8] sm:$0xff]
        %v966 = vld [vmem:[%s3 + $0x10] sm:$0xff]
        %v967 = vld [vmem:[%s3 + $0x18] sm:$0xff]
        %v968 = vld [vmem:[%s4] sm:$0x1]
        %v970 = vlaneseq
        %v971 = vshrl.u32 %v970, 7
        %v972 = vsub.s32 0, %v971
        %v973 = vrot.slane %v968, %v972
        %975 = vmatprep.subr.mxu0 0.0
        %v976 = vand.u32 %v964, 4294901760
        %977 = vmatpush1.xpose.msra.mxu0 %v976
        %978 = vmatprep.subr.mxu0 0.0
        %v979 = vand.u32 %v965, 4294901760
        %980 = vmatpush1.xpose.msra.mxu0 %v979
        %981 = vmatprep.subr.mxu0 0.0
        %v982 = vand.u32 %v966, 4294901760
        %983 = vmatpush1.xpose.msra.mxu0 %v982
        %984 = vmatprep.subr.mxu0 0.0
        %v985 = vand.u32 %v967, 4294901760
        %986 = vmatpush1.xpose.msra.mxu0 %v985
        %987 = vmatprep.subr.mxu0 0.0
        %988 = vmatpush1.xpose.msra.mxu0 0.0
        %989 = vmatprep.subr.mxu0 0.0
        %990 = vmatpush1.xpose.msra.mxu0 0.0
        %991 = vmatprep.subr.mxu0 0.0
        %992 = vmatpush1.xpose.msra.mxu0 0.0
        %993 = vmatprep.subr.mxu0 0.0
        %994 = vmatpush1.xpose.msra.mxu0 0.0
        %995 = vmatprep.subr.mxu0 0.0
        %996 = vmatpush1.xpose.msra.mxu0 0.0
        %997 = vmatprep.subr.mxu0 0.0
        %998 = vmatpush1.xpose.msra.mxu0 0.0
        %999 = vmatprep.subr.mxu0 0.0
        %1000 = vmatpush1.xpose.msra.mxu0 0.0
        %1001 = vmatprep.subr.mxu0 0.0
        %1002 = vmatpush1.xpose.msra.mxu0 0.0
        %1003 = vmatprep.subr.mxu0 0.0
        %1004 = vmatpush1.xpose.msra.mxu0 0.0
        %1005 = vmatprep.subr.mxu0 0.0
        %1006 = vmatpush1.xpose.msra.mxu0 0.0
        %1007 = vmatprep.subr.mxu0 0.0
        %1008 = vmatpush1.xpose.msra.mxu0 0.0
        %1009 = vmatprep.subr.mxu0 0.0
        %1010 = vmatpush1.xpose.msra.mxu0 0.0
        %1011 = vmatprep.subr.mxu0 0.0
        %1012 = vmatpush1.xpose.msra.mxu0 0.0
        %1013 = vmatprep.subr.mxu0 0.0
        %1014 = vmatpush1.xpose.msra.mxu0 0.0
        %1015 = vmatprep.subr.mxu0 0.0
        %1016 = vmatpush1.xpose.msra.mxu0 0.0
        %1017 = vmatprep.subr.mxu0 0.0
        %1018 = vmatpush1.xpose.msra.mxu0 0.0
        %1019 = vmatprep.subr.mxu0 0.0
        %1020 = vmatpush1.xpose.msra.mxu0 0.0
        %1021 = vmatprep.subr.mxu0 0.0
        %1022 = vmatpush1.xpose.msra.mxu0 0.0
        %1023 = vmatprep.subr.mxu0 0.0
        %1024 = vmatpush1.xpose.msra.mxu0 0.0
        %1025 = vmatprep.subr.mxu0 0.0
        %1026 = vmatpush1.xpose.msra.mxu0 0.0
        %1027 = vmatprep.subr.mxu0 0.0
        %1028 = vmatpush1.xpose.msra.mxu0 0.0
        %1029 = vmatprep.subr.mxu0 0.0
        %1030 = vmatpush1.xpose.msra.mxu0 0.0
        %1031 = vmatprep.subr.mxu0 0.0
        %1032 = vmatpush1.xpose.msra.mxu0 0.0
        %1033 = vmatprep.subr.mxu0 0.0
        %1034 = vmatpush1.xpose.msra.mxu0 0.0
        %1035 = vmatprep.subr.mxu0 0.0
        %1036 = vmatpush1.xpose.msra.mxu0 0.0
        %1037 = vmatprep.subr.mxu0 0.0
        %1038 = vmatpush1.xpose.msra.mxu0 0.0
        %1039 = vmatprep.subr.mxu0 0.0
        %1040 = vmatpush1.xpose.msra.mxu0 0.0
        %1041 = vmatprep.subr.mxu0 0.0
        %1042 = vmatpush1.xpose.msra.mxu0 0.0
        %1043 = vmatprep.mubr.f32.mxu0 0.0
        %v1044 = vand.u32 %v963, 4294901760
        %v1045 = vsub.f32 %v963, %v1044
        %v1046 = vand.u32 %v1045, 4294901760
        %v1047 = vsub.f32 %v1045, %v1046
        %v1048 = vand.u32 %v1047, 4294901760
        %1049 = vmatmul.mubr.f32.gmra.mrb[0].mxu0 %v1048
        %v1050 = vpop.f32.mrb[0].mxu0
        %v1051 = vadd.f32 %v973, %v1050
        %v1052 = vpop.f32.mrb[0].mxu0
        %1053 = vdwg.mxu0
        %1054 = vmatprep.subr.mxu0 0.0
        %v1055 = vand.u32 %v964, 4294901760
        %v1056 = vsub.f32 %v964, %v1055
        %v1057 = vand.u32 %v1056, 4294901760
        %v1058 = vsub.f32 %v1056, %v1057
        %v1059 = vand.u32 %v1058, 4294901760
        %1060 = vmatpush1.xpose.msra.mxu0 %v1059
        %1061 = vmatprep.subr.mxu0 0.0
        %v1062 = vand.u32 %v965, 4294901760
        %v1063 = vsub.f32 %v965, %v1062
        %v1064 = vand.u32 %v1063, 4294901760
        %v1065 = vsub.f32 %v1063, %v1064
        %v1066 = vand.u32 %v1065, 4294901760
        %1067 = vmatpush1.xpose.msra.mxu0 %v1066
        %1068 = vmatprep.subr.mxu0 0.0
        %v1069 = vand.u32 %v966, 4294901760
        %v1070 = vsub.f32 %v966, %v1069
        %v1071 = vand.u32 %v1070, 4294901760
        %v1072 = vsub.f32 %v1070, %v1071
        %v1073 = vand.u32 %v1072, 4294901760
        %1074 = vmatpush1.xpose.msra.mxu0 %v1073
        %1075 = vmatprep.subr.mxu0 0.0
        %v1076 = vand.u32 %v967, 4294901760
        %v1077 = vsub.f32 %v967, %v1076
        %v1078 = vand.u32 %v1077, 4294901760
        %v1079 = vsub.f32 %v1077, %v1078
        %v1080 = vand.u32 %v1079, 4294901760
        %1081 = vmatpush1.xpose.msra.mxu0 %v1080
        %1082 = vmatprep.subr.mxu0 0.0
        %1083 = vmatpush1.xpose.msra.mxu0 0.0
        %1084 = vmatprep.subr.mxu0 0.0
        %1085 = vmatpush1.xpose.msra.mxu0 0.0
        %1086 = vmatprep.subr.mxu0 0.0
        %1087 = vmatpush1.xpose.msra.mxu0 0.0
        %1088 = vmatprep.subr.mxu0 0.0
        %1089 = vmatpush1.xpose.msra.mxu0 0.0
        %1090 = vmatprep.subr.mxu0 0.0
        %1091 = vmatpush1.xpose.msra.mxu0 0.0
        %1092 = vmatprep.subr.mxu0 0.0
        %1093 = vmatpush1.xpose.msra.mxu0 0.0
        %1094 = vmatprep.subr.mxu0 0.0
        %1095 = vmatpush1.xpose.msra.mxu0 0.0
        %1096 = vmatprep.subr.mxu0 0.0
        %1097 = vmatpush1.xpose.msra.mxu0 0.0
        %1098 = vmatprep.subr.mxu0 0.0
        %1099 = vmatpush1.xpose.msra.mxu0 0.0
        %1100 = vmatprep.subr.mxu0 0.0
        %1101 = vmatpush1.xpose.msra.mxu0 0.0
        %1102 = vmatprep.subr.mxu0 0.0
        %1103 = vmatpush1.xpose.msra.mxu0 0.0
        %1104 = vmatprep.subr.mxu0 0.0
        %1105 = vmatpush1.xpose.msra.mxu0 0.0
        %1106 = vmatprep.subr.mxu0 0.0
        %1107 = vmatpush1.xpose.msra.mxu0 0.0
        %1108 = vmatprep.subr.mxu0 0.0
        %1109 = vmatpush1.xpose.msra.mxu0 0.0
        %1110 = vmatprep.subr.mxu0 0.0
        %1111 = vmatpush1.xpose.msra.mxu0 0.0
        %1112 = vmatprep.subr.mxu0 0.0
        %1113 = vmatpush1.xpose.msra.mxu0 0.0
        %1114 = vmatprep.subr.mxu0 0.0
        %1115 = vmatpush1.xpose.msra.mxu0 0.0
        %1116 = vmatprep.subr.mxu0 0.0
        %1117 = vmatpush1.xpose.msra.mxu0 0.0
        %1118 = vmatprep.subr.mxu0 0.0
        %1119 = vmatpush1.xpose.msra.mxu0 0.0
        %1120 = vmatprep.subr.mxu0 0.0
        %1121 = vmatpush1.xpose.msra.mxu0 0.0
        %1122 = vmatprep.subr.mxu0 0.0
        %1123 = vmatpush1.xpose.msra.mxu0 0.0
        %1124 = vmatprep.subr.mxu0 0.0
        %1125 = vmatpush1.xpose.msra.mxu0 0.0
        %1126 = vmatprep.subr.mxu0 0.0
        %1127 = vmatpush1.xpose.msra.mxu0 0.0
        %1128 = vmatprep.subr.mxu0 0.0
        %1129 = vmatpush1.xpose.msra.mxu0 0.0
        %1130 = vmatprep.subr.mxu0 0.0
        %1131 = vmatpush1.xpose.msra.mxu0 0.0
        %1132 = vmatprep.subr.mxu0 0.0
        %1133 = vmatpush1.xpose.msra.mxu0 0.0
        %1134 = vmatprep.subr.mxu0 0.0
        %1135 = vmatpush1.xpose.msra.mxu0 0.0
        %1136 = vmatprep.subr.mxu0 0.0
        %1137 = vmatpush1.xpose.msra.mxu0 0.0
        %1138 = vmatprep.mubr.f32.mxu0 0.0
        %v1139 = vand.u32 %v963, 4294901760
        %1140 = vmatmul.mubr.f32.gmra.mrb[0].mxu0 %v1139
        %v1141 = vpop.f32.mrb[0].mxu0
        %v1142 = vadd.f32 %v1051, %v1141
        %v1143 = vpop.f32.mrb[0].mxu0
        %1144 = vdwg.mxu0
        %1145 = vmatprep.subr.mxu0 0.0
        %v1146 = vand.u32 %v964, 4294901760
        %v1147 = vsub.f32 %v964, %v1146
        %1148 = vmatpush1.xpose.msra.mxu0 %v1147
        %1149 = vmatprep.subr.mxu0 0.0
        %v1150 = vand.u32 %v965, 4294901760
        %v1151 = vsub.f32 %v965, %v1150
        %1152 = vmatpush1.xpose.msra.mxu0 %v1151
        %1153 = vmatprep.subr.mxu0 0.0
        %v1154 = vand.u32 %v966, 4294901760
        %v1155 = vsub.f32 %v966, %v1154
        %1156 = vmatpush1.xpose.msra.mxu0 %v1155
        %1157 = vmatprep.subr.mxu0 0.0
        %v1158 = vand.u32 %v967, 4294901760
        %v1159 = vsub.f32 %v967, %v1158
        %1160 = vmatpush1.xpose.msra.mxu0 %v1159
        %1161 = vmatprep.subr.mxu0 0.0
        %1162 = vmatpush1.xpose.msra.mxu0 0.0
        %1163 = vmatprep.subr.mxu0 0.0
        %1164 = vmatpush1.xpose.msra.mxu0 0.0
        %1165 = vmatprep.subr.mxu0 0.0
        %1166 = vmatpush1.xpose.msra.mxu0 0.0
        %1167 = vmatprep.subr.mxu0 0.0
        %1168 = vmatpush1.xpose.msra.mxu0 0.0
        %1169 = vmatprep.subr.mxu0 0.0
        %1170 = vmatpush1.xpose.msra.mxu0 0.0
        %1171 = vmatprep.subr.mxu0 0.0
        %1172 = vmatpush1.xpose.msra.mxu0 0.0
        %1173 = vmatprep.subr.mxu0 0.0
        %1174 = vmatpush1.xpose.msra.mxu0 0.0
        %1175 = vmatprep.subr.mxu0 0.0
        %1176 = vmatpush1.xpose.msra.mxu0 0.0
        %1177 = vmatprep.subr.mxu0 0.0
        %1178 = vmatpush1.xpose.msra.mxu0 0.0
        %1179 = vmatprep.subr.mxu0 0.0
        %1180 = vmatpush1.xpose.msra.mxu0 0.0
        %1181 = vmatprep.subr.mxu0 0.0
        %1182 = vmatpush1.xpose.msra.mxu0 0.0
        %1183 = vmatprep.subr.mxu0 0.0
        %1184 = vmatpush1.xpose.msra.mxu0 0.0
        %1185 = vmatprep.subr.mxu0 0.0
        %1186 = vmatpush1.xpose.msra.mxu0 0.0
        %1187 = vmatprep.subr.mxu0 0.0
        %1188 = vmatpush1.xpose.msra.mxu0 0.0
        %1189 = vmatprep.subr.mxu0 0.0
        %1190 = vmatpush1.xpose.msra.mxu0 0.0
        %1191 = vmatprep.subr.mxu0 0.0
        %1192 = vmatpush1.xpose.msra.mxu0 0.0
        %1193 = vmatprep.subr.mxu0 0.0
        %1194 = vmatpush1.xpose.msra.mxu0 0.0
        %1195 = vmatprep.subr.mxu0 0.0
        %1196 = vmatpush1.xpose.msra.mxu0 0.0
        %1197 = vmatprep.subr.mxu0 0.0
        %1198 = vmatpush1.xpose.msra.mxu0 0.0
        %1199 = vmatprep.subr.mxu0 0.0
        %1200 = vmatpush1.xpose.msra.mxu0 0.0
        %1201 = vmatprep.subr.mxu0 0.0
        %1202 = vmatpush1.xpose.msra.mxu0 0.0
        %1203 = vmatprep.subr.mxu0 0.0
        %1204 = vmatpush1.xpose.msra.mxu0 0.0
        %1205 = vmatprep.subr.mxu0 0.0
        %1206 = vmatpush1.xpose.msra.mxu0 0.0
        %1207 = vmatprep.subr.mxu0 0.0
        %1208 = vmatpush1.xpose.msra.mxu0 0.0
        %1209 = vmatprep.subr.mxu0 0.0
        %1210 = vmatpush1.xpose.msra.mxu0 0.0
        %1211 = vmatprep.subr.mxu0 0.0
        %1212 = vmatpush1.xpose.msra.mxu0 0.0
        %1213 = vmatprep.subr.mxu0 0.0
        %1214 = vmatpush1.xpose.msra.mxu0 0.0
        %1215 = vmatprep.subr.mxu0 0.0
        %1216 = vmatpush1.xpose.msra.mxu0 0.0
        %1217 = vmatprep.mubr.f32.mxu0 0.0
        %v1218 = vand.u32 %v963, 4294901760
        %v1219 = vsub.f32 %v963, %v1218
        %1220 = vmatmul.mubr.f32.gmra.mrb[0].mxu0 %v1219
        %v1221 = vpop.f32.mrb[0].mxu0
        %v1222 = vadd.f32 %v1142, %v1221
        %v1223 = vpop.f32.mrb[0].mxu0
        %1224 = vdwg.mxu0
        %1225 = vmatprep.subr.mxu0 0.0
        %v1226 = vand.u32 %v964, 4294901760
        %1227 = vmatpush1.xpose.msra.mxu0 %v1226
        %1228 = vmatprep.subr.mxu0 0.0
        %v1229 = vand.u32 %v965, 4294901760
        %1230 = vmatpush1.xpose.msra.mxu0 %v1229
        %1231 = vmatprep.subr.mxu0 0.0
        %v1232 = vand.u32 %v966, 4294901760
        %1233 = vmatpush1.xpose.msra.mxu0 %v1232
        %1234 = vmatprep.subr.mxu0 0.0
        %v1235 = vand.u32 %v967, 4294901760
        %1236 = vmatpush1.xpose.msra.mxu0 %v1235
        %1237 = vmatprep.subr.mxu0 0.0
        %1238 = vmatpush1.xpose.msra.mxu0 0.0
        %1239 = vmatprep.subr.mxu0 0.0
        %1240 = vmatpush1.xpose.msra.mxu0 0.0
        %1241 = vmatprep.subr.mxu0 0.0
        %1242 = vmatpush1.xpose.msra.mxu0 0.0
        %1243 = vmatprep.subr.mxu0 0.0
        %1244 = vmatpush1.xpose.msra.mxu0 0.0
        %1245 = vmatprep.subr.mxu0 0.0
        %1246 = vmatpush1.xpose.msra.mxu0 0.0
        %1247 = vmatprep.subr.mxu0 0.0
        %1248 = vmatpush1.xpose.msra.mxu0 0.0
        %1249 = vmatprep.subr.mxu0 0.0
        %1250 = vmatpush1.xpose.msra.mxu0 0.0
        %1251 = vmatprep.subr.mxu0 0.0
        %1252 = vmatpush1.xpose.msra.mxu0 0.0
        %1253 = vmatprep.subr.mxu0 0.0
        %1254 = vmatpush1.xpose.msra.mxu0 0.0
        %1255 = vmatprep.subr.mxu0 0.0
        %1256 = vmatpush1.xpose.msra.mxu0 0.0
        %1257 = vmatprep.subr.mxu0 0.0
        %1258 = vmatpush1.xpose.msra.mxu0 0.0
        %1259 = vmatprep.subr.mxu0 0.0
        %1260 = vmatpush1.xpose.msra.mxu0 0.0
        %1261 = vmatprep.subr.mxu0 0.0
        %1262 = vmatpush1.xpose.msra.mxu0 0.0
        %1263 = vmatprep.subr.mxu0 0.0
        %1264 = vmatpush1.xpose.msra.mxu0 0.0
        %1265 = vmatprep.subr.mxu0 0.0
        %1266 = vmatpush1.xpose.msra.mxu0 0.0
        %1267 = vmatprep.subr.mxu0 0.0
        %1268 = vmatpush1.xpose.msra.mxu0 0.0
        %1269 = vmatprep.subr.mxu0 0.0
        %1270 = vmatpush1.xpose.msra.mxu0 0.0
        %1271 = vmatprep.subr.mxu0 0.0
        %1272 = vmatpush1.xpose.msra.mxu0 0.0
        %1273 = vmatprep.subr.mxu0 0.0
        %1274 = vmatpush1.xpose.msra.mxu0 0.0
        %1275 = vmatprep.subr.mxu0 0.0
        %1276 = vmatpush1.xpose.msra.mxu0 0.0
        %1277 = vmatprep.subr.mxu0 0.0
        %1278 = vmatpush1.xpose.msra.mxu0 0.0
        %1279 = vmatprep.subr.mxu0 0.0
        %1280 = vmatpush1.xpose.msra.mxu0 0.0
        %1281 = vmatprep.subr.mxu0 0.0
        %1282 = vmatpush1.xpose.msra.mxu0 0.0
        %1283 = vmatprep.subr.mxu0 0.0
        %1284 = vmatpush1.xpose.msra.mxu0 0.0
        %1285 = vmatprep.subr.mxu0 0.0
        %1286 = vmatpush1.xpose.msra.mxu0 0.0
        %1287 = vmatprep.subr.mxu0 0.0
        %1288 = vmatpush1.xpose.msra.mxu0 0.0
        %1289 = vmatprep.subr.mxu0 0.0
        %1290 = vmatpush1.xpose.msra.mxu0 0.0
        %1291 = vmatprep.subr.mxu0 0.0
        %1292 = vmatpush1.xpose.msra.mxu0 0.0
        %1293 = vmatprep.mubr.f32.mxu0 0.0
        %v1294 = vand.u32 %v963, 4294901760
        %v1295 = vsub.f32 %v963, %v1294
        %v1296 = vand.u32 %v1295, 4294901760
        %1297 = vmatmul.mubr.f32.gmra.mrb[0].mxu0 %v1296
        %v1298 = vpop.f32.mrb[0].mxu0
        %v1299 = vadd.f32 %v1222, %v1298
        %v1300 = vpop.f32.mrb[0].mxu0
        %1301 = vdwg.mxu0
        %1302 = vmatprep.subr.mxu0 0.0
        %v1303 = vand.u32 %v964, 4294901760
        %v1304 = vsub.f32 %v964, %v1303
        %v1305 = vand.u32 %v1304, 4294901760
        %1306 = vmatpush1.xpose.msra.mxu0 %v1305
        %1307 = vmatprep.subr.mxu0 0.0
        %v1308 = vand.u32 %v965, 4294901760
        %v1309 = vsub.f32 %v965, %v1308
        %v1310 = vand.u32 %v1309, 4294901760
        %1311 = vmatpush1.xpose.msra.mxu0 %v1310
        %1312 = vmatprep.subr.mxu0 0.0
        %v1313 = vand.u32 %v966, 4294901760
        %v1314 = vsub.f32 %v966, %v1313
        %v1315 = vand.u32 %v1314, 4294901760
        %1316 = vmatpush1.xpose.msra.mxu0 %v1315
        %1317 = vmatprep.subr.mxu0 0.0
        %v1318 = vand.u32 %v967, 4294901760
        %v1319 = vsub.f32 %v967, %v1318
        %v1320 = vand.u32 %v1319, 4294901760
        %1321 = vmatpush1.xpose.msra.mxu0 %v1320
        %1322 = vmatprep.subr.mxu0 0.0
        %1323 = vmatpush1.xpose.msra.mxu0 0.0
        %1324 = vmatprep.subr.mxu0 0.0
        %1325 = vmatpush1.xpose.msra.mxu0 0.0
        %1326 = vmatprep.subr.mxu0 0.0
        %1327 = vmatpush1.xpose.msra.mxu0 0.0
        %1328 = vmatprep.subr.mxu0 0.0
        %1329 = vmatpush1.xpose.msra.mxu0 0.0
        %1330 = vmatprep.subr.mxu0 0.0
        %1331 = vmatpush1.xpose.msra.mxu0 0.0
        %1332 = vmatprep.subr.mxu0 0.0
        %1333 = vmatpush1.xpose.msra.mxu0 0.0
        %1334 = vmatprep.subr.mxu0 0.0
        %1335 = vmatpush1.xpose.msra.mxu0 0.0
        %1336 = vmatprep.subr.mxu0 0.0
        %1337 = vmatpush1.xpose.msra.mxu0 0.0
        %1338 = vmatprep.subr.mxu0 0.0
        %1339 = vmatpush1.xpose.msra.mxu0 0.0
        %1340 = vmatprep.subr.mxu0 0.0
        %1341 = vmatpush1.xpose.msra.mxu0 0.0
        %1342 = vmatprep.subr.mxu0 0.0
        %1343 = vmatpush1.xpose.msra.mxu0 0.0
        %1344 = vmatprep.subr.mxu0 0.0
        %1345 = vmatpush1.xpose.msra.mxu0 0.0
        %1346 = vmatprep.subr.mxu0 0.0
        %1347 = vmatpush1.xpose.msra.mxu0 0.0
        %1348 = vmatprep.subr.mxu0 0.0
        %1349 = vmatpush1.xpose.msra.mxu0 0.0
        %1350 = vmatprep.subr.mxu0 0.0
        %1351 = vmatpush1.xpose.msra.mxu0 0.0
        %1352 = vmatprep.subr.mxu0 0.0
        %1353 = vmatpush1.xpose.msra.mxu0 0.0
        %1354 = vmatprep.subr.mxu0 0.0
        %1355 = vmatpush1.xpose.msra.mxu0 0.0
        %1356 = vmatprep.subr.mxu0 0.0
        %1357 = vmatpush1.xpose.msra.mxu0 0.0
        %1358 = vmatprep.subr.mxu0 0.0
        %1359 = vmatpush1.xpose.msra.mxu0 0.0
        %1360 = vmatprep.subr.mxu0 0.0
        %1361 = vmatpush1.xpose.msra.mxu0 0.0
        %1362 = vmatprep.subr.mxu0 0.0
        %1363 = vmatpush1.xpose.msra.mxu0 0.0
        %1364 = vmatprep.subr.mxu0 0.0
        %1365 = vmatpush1.xpose.msra.mxu0 0.0
        %1366 = vmatprep.subr.mxu0 0.0
        %1367 = vmatpush1.xpose.msra.mxu0 0.0
        %1368 = vmatprep.subr.mxu0 0.0
        %1369 = vmatpush1.xpose.msra.mxu0 0.0
        %1370 = vmatprep.subr.mxu0 0.0
        %1371 = vmatpush1.xpose.msra.mxu0 0.0
        %1372 = vmatprep.subr.mxu0 0.0
        %1373 = vmatpush1.xpose.msra.mxu0 0.0
        %1374 = vmatprep.subr.mxu0 0.0
        %1375 = vmatpush1.xpose.msra.mxu0 0.0
        %1376 = vmatprep.subr.mxu0 0.0
        %1377 = vmatpush1.xpose.msra.mxu0 0.0
        %1378 = vmatprep.mubr.f32.mxu0 0.0
        %v1379 = vand.u32 %v963, 4294901760
        %1380 = vmatmul.mubr.f32.gmra.mrb[0].mxu0 %v1379
        %v1381 = vpop.f32.mrb[0].mxu0
        %v1382 = vadd.f32 %v1299, %v1381
        %v1383 = vpop.f32.mrb[0].mxu0
        %1384 = vdwg.mxu0
        %1385 = vmatprep.subr.mxu0 0.0
        %v1386 = vand.u32 %v964, 4294901760
        %1387 = vmatpush1.xpose.msra.mxu0 %v1386
        %1388 = vmatprep.subr.mxu0 0.0
        %v1389 = vand.u32 %v965, 4294901760
        %1390 = vmatpush1.xpose.msra.mxu0 %v1389
        %1391 = vmatprep.subr.mxu0 0.0
        %v1392 = vand.u32 %v966, 4294901760
        %1393 = vmatpush1.xpose.msra.mxu0 %v1392
        %1394 = vmatprep.subr.mxu0 0.0
        %v1395 = vand.u32 %v967, 4294901760
        %1396 = vmatpush1.xpose.msra.mxu0 %v1395
        %1397 = vmatprep.subr.mxu0 0.0
        %1398 = vmatpush1.xpose.msra.mxu0 0.0
        %1399 = vmatprep.subr.mxu0 0.0
        %1400 = vmatpush1.xpose.msra.mxu0 0.0
        %1401 = vmatprep.subr.mxu0 0.0
        %1402 = vmatpush1.xpose.msra.mxu0 0.0
        %1403 = vmatprep.subr.mxu0 0.0
        %1404 = vmatpush1.xpose.msra.mxu0 0.0
        %1405 = vmatprep.subr.mxu0 0.0
        %1406 = vmatpush1.xpose.msra.mxu0 0.0
        %1407 = vmatprep.subr.mxu0 0.0
        %1408 = vmatpush1.xpose.msra.mxu0 0.0
        %1409 = vmatprep.subr.mxu0 0.0
        %1410 = vmatpush1.xpose.msra.mxu0 0.0
        %1411 = vmatprep.subr.mxu0 0.0
        %1412 = vmatpush1.xpose.msra.mxu0 0.0
        %1413 = vmatprep.subr.mxu0 0.0
        %1414 = vmatpush1.xpose.msra.mxu0 0.0
        %1415 = vmatprep.subr.mxu0 0.0
        %1416 = vmatpush1.xpose.msra.mxu0 0.0
        %1417 = vmatprep.subr.mxu0 0.0
        %1418 = vmatpush1.xpose.msra.mxu0 0.0
        %1419 = vmatprep.subr.mxu0 0.0
        %1420 = vmatpush1.xpose.msra.mxu0 0.0
        %1421 = vmatprep.subr.mxu0 0.0
        %1422 = vmatpush1.xpose.msra.mxu0 0.0
        %1423 = vmatprep.subr.mxu0 0.0
        %1424 = vmatpush1.xpose.msra.mxu0 0.0
        %1425 = vmatprep.subr.mxu0 0.0
        %1426 = vmatpush1.xpose.msra.mxu0 0.0
        %1427 = vmatprep.subr.mxu0 0.0
        %1428 = vmatpush1.xpose.msra.mxu0 0.0
        %1429 = vmatprep.subr.mxu0 0.0
        %1430 = vmatpush1.xpose.msra.mxu0 0.0
        %1431 = vmatprep.subr.mxu0 0.0
        %1432 = vmatpush1.xpose.msra.mxu0 0.0
        %1433 = vmatprep.subr.mxu0 0.0
        %1434 = vmatpush1.xpose.msra.mxu0 0.0
        %1435 = vmatprep.subr.mxu0 0.0
        %1436 = vmatpush1.xpose.msra.mxu0 0.0
        %1437 = vmatprep.subr.mxu0 0.0
        %1438 = vmatpush1.xpose.msra.mxu0 0.0
        %1439 = vmatprep.subr.mxu0 0.0
        %1440 = vmatpush1.xpose.msra.mxu0 0.0
        %1441 = vmatprep.subr.mxu0 0.0
        %1442 = vmatpush1.xpose.msra.mxu0 0.0
        %1443 = vmatprep.subr.mxu0 0.0
        %1444 = vmatpush1.xpose.msra.mxu0 0.0
        %1445 = vmatprep.subr.mxu0 0.0
        %1446 = vmatpush1.xpose.msra.mxu0 0.0
        %1447 = vmatprep.subr.mxu0 0.0
        %1448 = vmatpush1.xpose.msra.mxu0 0.0
        %1449 = vmatprep.subr.mxu0 0.0
        %1450 = vmatpush1.xpose.msra.mxu0 0.0
        %1451 = vmatprep.subr.mxu0 0.0
        %1452 = vmatpush1.xpose.msra.mxu0 0.0
        %1453 = vmatprep.mubr.f32.mxu0 0.0
        %v1454 = vand.u32 %v963, 4294901760
        %1455 = vmatmul.mubr.f32.gmra.mrb[0].mxu0 %v1454
        %v1456 = vpop.f32.mrb[0].mxu0
        %v1457 = vadd.f32 %v1382, %v1456
        %v1458 = vpop.f32.mrb[0].mxu0
        %1459 = vdwg.mxu0
        %1460 = vst.msk [vmem:[%s215] sm:$0xff] %vm244, %v1457
        %s1461 = sand.u32 %s137, 1
        %s1462 = scalar_lea.sflag [#allocation3], %s1461
        %s1463 = sand.u32 %s137, 1
        %s1464 = smul.addr %s1463, 8
        %s1465 = scalar_lea.vmem [#allocation2], %s1464
        // Predicated region
        $region41: #{feed_forward.1} parent=39 // pred_check
          %p1466 = pneg %p147
        $region42: #{feed_forward.1} parent=39 // pred_check_branch
          %1468 = sbr.rel (%p1466) target = $region44
        $region43: #{feed_forward.1} parent=39 // pred_region
          %s1470 = ssub.s32 128, 128
          %1471 = vsyncadd %s1462, %s1470
          %s1472 = smul.addr %s19, 128
          %s1473 = scalar_lea.hbm %s5, %s1472
          %s1475 = sshll.u32 %s1465, 4
          %s1476 = int_to_ptr.vmem [resolvable:$true] %s1475
          %1478 = dma.vmem_to_hbm [thread:$0]  %s1476, 128, %s1473, %s1462
        $region44: #{feed_forward.1} parent=39 // pred_fallthru
          _
      $region40: #{feed_forward.1} parent=5 // pred_fallthru
        _
      %p1479 = scmp.le.s32.totalorder 2, %s14
      // Predicated region
      $region45: #{feed_forward.1} parent=5 // pred_check
        %p1480 = pneg %p1479
      $region46: #{feed_forward.1} parent=5 // pred_check_branch
        %1482 = sbr.rel (%p1480) target = $region48
      $region47: #{feed_forward.1} parent=5 // pred_region
        %s1483 = ssub.s32 %s14, 2
        // Predicated region
        $region49: #{feed_forward.1} parent=47 // pred_check
          %p1484 = pneg %p153
        $region50: #{feed_forward.1} parent=47 // pred_check_branch
          %1486 = sbr.rel (%p1484) target = $region52
        $region51: #{feed_forward.1} parent=47 // pred_region
          %s1487 = sand.u32 %s138, 1
          %s1488 = scalar_lea.sflag [#allocation3], %s1487
          %s1489 = sand.u32 %s138, 1
          %s1490 = smul.addr %s1489, 8
          %s1491 = scalar_lea.vmem [#allocation2], %s1490
          %1492 = dma.done %s1488, 128
        $region52: #{feed_forward.1} parent=47 // pred_fallthru
          _
      $region48: #{feed_forward.1} parent=5 // pred_fallthru
        _
    $region6: #{feed_forward.1} parent=1 // loop_footer
      %s18 = sadd.s32 1, %s14
    $region7: #{feed_forward.1} parent=1 // loop_footer_branch
      %13 = sbr.rel target = $region3
    $region8: #{feed_forward.1} parent=1 // loop_exit
      _
    %1493 = vsyncpa [#allocation3], 1
    %s1494 = scalar_lea.sflag [#allocation3], 1
    %1495 = vsyncpa %s1494, 1

</llo_original>
